<compile_context>
chip_gen: v6e
topology: v6e:2x2x1
jax: 0.10.0
libtpu: 0.0.40
codegen_flags: <defaults>
</compile_context>

<pallas_src>
import math

import jax
import jax.numpy as jnp
from jax.experimental import pallas as pl
from jax.experimental.pallas import tpu as pltpu


def _round_up(x, m):
    return (x + m - 1) // m * m


def _choose_tm(n_rows, *, max_tm=1024, min_blocks=4):
    """Largest row tile (amortize per-grid-step overhead) while keeping >= min_blocks
    grid steps for pipelining / v7x megacore sharding.  Tiny inputs -> one block."""
    tm = max_tm
    while tm > 128 and (n_rows + tm - 1) // tm < min_blocks:
        tm //= 2
    return min(tm, _round_up(n_rows, 8))


# --------------------------------------------------------------------------- #
# Kernel: three K=F MXU dots + bias + tanh, then the final linear.            #
# All accumulation / bias / tanh in f32; matmul operands in wu_ref.dtype.     #
# --------------------------------------------------------------------------- #
def fcn_regression_kernel(xt_ref, tgt_ref, mt_ref,
                          wu_ref, wv1_ref, wv2_ref, beta_ref, w2_ref, bf_ref,
                          out_ref):
    """x/t/m: [TM, F]   wu/wv1/wv2: [F, FP]   beta/bf: [1, FP]   w2: [FP, FP]
    out: [TM, FP]."""
    wu = wu_ref[...]
    cdt = wu.dtype                                     # f32 or bf16 matmul operands
    pre = (jnp.dot(xt_ref[...].astype(cdt), wu,
                   preferred_element_type=jnp.float32)
           + jnp.dot(tgt_ref[...].astype(cdt), wv1_ref[...],
                     preferred_element_type=jnp.float32)
           + jnp.dot(mt_ref[...].astype(cdt), wv2_ref[...],
                     preferred_element_type=jnp.float32)
           + beta_ref[...])
    h = jnp.tanh(pre)                                  # f32 on the EUP
    y = jnp.dot(h.astype(cdt), w2_ref[...],
                preferred_element_type=jnp.float32) + bf_ref[...]
    out_ref[...] = y.astype(out_ref.dtype)


# --------------------------------------------------------------------------- #
# Host-side (one-time) weight preparation: mask, transpose, lane-pad, cast.   #
# --------------------------------------------------------------------------- #
def prepare_weights(params, compute_dtype=jnp.float32):
    F = params["U"].shape[0]
    FP = _round_up(F, 128)                 # lane-dense feature dim (do NOT widen to 256)
    mask = 1.0 - jnp.eye(F, dtype=jnp.float32)

    def pad_wT(w):                         # [F, F] -> W^T, lane-padded to [F, FP]
        return (jnp.zeros((F, FP), compute_dtype)
                .at[:, :F].set(w.T.astype(compute_dtype)))

    wu = pad_wT(params["U"] * mask)        # F.linear(x, W) == x @ W.T
    wv1 = pad_wT(params["V1"] * mask)
    wv2 = pad_wT(params["V2"])
    w2 = (jnp.zeros((FP, FP), compute_dtype)
          .at[:F, :F].set(params["W_final"].T.astype(compute_dtype)))
    beta = jnp.zeros((1, FP), jnp.float32).at[:, :F].set(params["beta"].reshape(1, F))
    bf = jnp.zeros((1, FP), jnp.float32).at[:, :F].set(params["b_final"].reshape(1, F))

    return {"wu": wu, "wv1": wv1, "wv2": wv2, "w2": w2, "beta": beta, "bf": bf,
            "F": F, "FP": FP}


# --------------------------------------------------------------------------- #
# Wrapper: batches any leading dims (e.g. [B, T, F]) through one pallas_call. #
# --------------------------------------------------------------------------- #
def fcn_regression(x_t, m_t, target, prep, *, return_padded=False):
    F, FP = prep["F"], prep["FP"]
    lead = x_t.shape[:-1]
    N = max(1, math.prod(lead))

    x2 = x_t.reshape(N, F)
    t2 = target.reshape(N, F)
    m2 = m_t.reshape(N, F)

    TM = _choose_tm(N)
    N_pad = _round_up(N, TM)
    if N_pad != N:                                   # demo sizes avoid this entirely
        padcfg = ((0, N_pad - N), (0, 0))
        x2 = jnp.pad(x2, padcfg)
        t2 = jnp.pad(t2, padcfg)
        m2 = jnp.pad(m2, padcfg)

    out = pl.pallas_call(
        fcn_regression_kernel,
        out_shape=jax.ShapeDtypeStruct((N_pad, FP), x_t.dtype),
        grid=(N_pad // TM,),
        in_specs=[
            pl.BlockSpec((TM, F), lambda i: (i, 0)),     # x_t rows: streamed
            pl.BlockSpec((TM, F), lambda i: (i, 0)),     # target rows: streamed
            pl.BlockSpec((TM, F), lambda i: (i, 0)),     # m_t rows: streamed
            pl.BlockSpec((F, FP), lambda i: (0, 0)),     # (U*m)^T: resident
            pl.BlockSpec((F, FP), lambda i: (0, 0)),     # (V1*m)^T: resident
            pl.BlockSpec((F, FP), lambda i: (0, 0)),     # V2^T: resident
            pl.BlockSpec((1, FP), lambda i: (0, 0)),     # beta: resident
            pl.BlockSpec((FP, FP), lambda i: (0, 0)),    # W_final^T: resident
            pl.BlockSpec((1, FP), lambda i: (0, 0)),     # b_final: resident
        ],
        out_specs=pl.BlockSpec((TM, FP), lambda i: (i, 0)),
        compiler_params=pltpu.CompilerParams(
            dimension_semantics=("parallel",)),          # shards across v7x's 2 TCs
    )(x2, t2, m2, prep["wu"], prep["wv1"], prep["wv2"],
      prep["beta"], prep["w2"], prep["bf"])

    if return_padded:          # let the model defer the unpad/slice to its very end
        return out
    return out[:N, :F].reshape(*lead, F)


# --------------------------------------------------------------------------- #
# Parameter init (mirrors reset_parameters) and plain-JAX reference.          #
# --------------------------------------------------------------------------- #
def init_params(key, feature_num):
    stdv = 1.0 / math.sqrt(feature_num)
    ks = jax.random.split(key, 6)
    uni = lambda k, shape: jax.random.uniform(k, shape, jnp.float32, -stdv, stdv)
    return {
        "U":       uni(ks[0], (feature_num, feature_num)),
        "V1":      uni(ks[1], (feature_num, feature_num)),
        "V2":      uni(ks[2], (feature_num, feature_num)),
        "beta":    uni(ks[3], (feature_num,)),
        "W_final": uni(ks[4], (feature_num, feature_num)),
        "b_final": uni(ks[5], (feature_num,)),
    }


def reference_forward(x_t, m_t, target, params):
    """Plain-JAX mirror of the PyTorch forward (works on any leading dims)."""
    F = params["U"].shape[0]
    mask = jnp.ones((F, F), jnp.float32) - jnp.eye(F, dtype=jnp.float32)
    h = jnp.tanh(x_t @ (params["U"] * mask).T
                 + target @ (params["V1"] * mask).T
                 + m_t @ params["V2"].T
                 + params["beta"])
    return h @ params["W_final"].T + params["b_final"]


if __name__ == "__main__":
    # All (batch, timestep) rows of MRNN.impute are batched into ONE pallas_call.
    # B*T = 1024 rows -> TM = 256, grid = (4,): 4 pipelined blocks, 2 per TC on v7x.
    B = 32       # batch
    T = 32       # seq_len
    FEAT = 32    # feature_num; rnn_hid_size only feeds the unused self.feat_reg.

    key = jax.random.PRNGKey(0)
    k_params, k_x, k_m, k_t = jax.random.split(key, 4)

    params = init_params(k_params, FEAT)
    x = jax.random.normal(k_x, (B, T, FEAT), jnp.float32)
    m = (jax.random.uniform(k_m, (B, T, FEAT)) > 0.5).astype(jnp.float32)  # missingness mask
    target = jax.random.normal(k_t, (B, T, FEAT), jnp.float32)             # RNN_imputed_data stand-in

    ref = reference_forward(x, m, target, params)

    # f32 MXU operands: tight accuracy (default path).
    prep_f32 = prepare_weights(params, jnp.float32)
    out_f32 = jax.block_until_ready(fcn_regression(x, m, target, prep_f32))
    assert out_f32.shape == (B, T, FEAT)
    assert jnp.allclose(out_f32, ref, atol=2e-5, rtol=2e-5), "f32 mismatch vs reference"

    # bf16 MXU operands (MXU-native on v5e/v6e/v7x): same kernel, looser tolerance.
    prep_bf16 = prepare_weights(params, jnp.bfloat16)
    out_bf16 = jax.block_until_ready(fcn_regression(x, m, target, prep_bf16))
    assert out_bf16.shape == (B, T, FEAT)
    assert jnp.allclose(out_bf16, ref, atol=5e-2, rtol=5e-2), "bf16 mismatch vs reference"

    print("KERNEL_OK")
</pallas_src>

<mosaic_0001>
module attributes {stable_mosaic.version = 11 : i64} {
  func.func @fcn_regression_kernel(%arg0: i32, %arg1: memref<256x32xf32, #tpu.memory_space<vmem>>, %arg2: memref<256x32xf32, #tpu.memory_space<vmem>>, %arg3: memref<256x32xf32, #tpu.memory_space<vmem>>, %arg4: memref<32x128xf32, #tpu.memory_space<vmem>>, %arg5: memref<32x128xf32, #tpu.memory_space<vmem>>, %arg6: memref<32x128xf32, #tpu.memory_space<vmem>>, %arg7: memref<1x128xf32, #tpu.memory_space<vmem>>, %arg8: memref<128x128xf32, #tpu.memory_space<vmem>>, %arg9: memref<1x128xf32, #tpu.memory_space<vmem>>, %arg10: memref<256x128xf32, #tpu.memory_space<vmem>>) attributes {dimension_semantics = [#tpu.dimension_semantics<parallel>], iteration_bounds = array<i64: 4>, scalar_prefetch = 0 : i64, scratch_operands = 0 : i64, tpu.core_type = #tpu.core_type<tc>, window_params = [{transform_indices = @transform_0, window_bounds = array<i64: 256, 32>}, {transform_indices = @transform_1, window_bounds = array<i64: 256, 32>}, {transform_indices = @transform_2, window_bounds = array<i64: 256, 32>}, {pipeline_mode = #tpu.pipeline_mode<synchronous>, transform_indices = @transform_3, window_bounds = array<i64: 32, 128>}, {pipeline_mode = #tpu.pipeline_mode<synchronous>, transform_indices = @transform_4, window_bounds = array<i64: 32, 128>}, {pipeline_mode = #tpu.pipeline_mode<synchronous>, transform_indices = @transform_5, window_bounds = array<i64: 32, 128>}, {pipeline_mode = #tpu.pipeline_mode<synchronous>, transform_indices = @transform_6, window_bounds = array<i64: 1, 128>}, {pipeline_mode = #tpu.pipeline_mode<synchronous>, transform_indices = @transform_7, window_bounds = array<i64: 128, 128>}, {pipeline_mode = #tpu.pipeline_mode<synchronous>, transform_indices = @transform_8, window_bounds = array<i64: 1, 128>}, {transform_indices = @transform_9, window_bounds = array<i64: 256, 128>}]} {
    %c0 = arith.constant 0 : index
    %c0_0 = arith.constant 0 : index
    %0 = vector.load %arg4[%c0, %c0_0] : memref<32x128xf32, #tpu.memory_space<vmem>>, vector<32x128xf32>
    %c0_1 = arith.constant 0 : index
    %c0_2 = arith.constant 0 : index
    %1 = vector.load %arg1[%c0_1, %c0_2] : memref<256x32xf32, #tpu.memory_space<vmem>>, vector<256x32xf32>
    %cst = arith.constant dense<0.000000e+00> : vector<256x128xf32>
    %2 = tpu.matmul %1, %0, %cst {dimension_numbers = #tpu.dot_dimension_numbers<[1], [0], [0], [1], [0, 0, 1, 1], [], []>} : vector<256x32xf32>, vector<32x128xf32>, vector<256x128xf32> -> vector<256x128xf32>
    %c0_3 = arith.constant 0 : index
    %c0_4 = arith.constant 0 : index
    %3 = vector.load %arg2[%c0_3, %c0_4] : memref<256x32xf32, #tpu.memory_space<vmem>>, vector<256x32xf32>
    %c0_5 = arith.constant 0 : index
    %c0_6 = arith.constant 0 : index
    %4 = vector.load %arg5[%c0_5, %c0_6] : memref<32x128xf32, #tpu.memory_space<vmem>>, vector<32x128xf32>
    %cst_7 = arith.constant dense<0.000000e+00> : vector<256x128xf32>
    %5 = tpu.matmul %3, %4, %cst_7 {dimension_numbers = #tpu.dot_dimension_numbers<[1], [0], [0], [1], [0, 0, 1, 1], [], []>} : vector<256x32xf32>, vector<32x128xf32>, vector<256x128xf32> -> vector<256x128xf32>
    %6 = arith.addf %2, %5 : vector<256x128xf32>
    %c0_8 = arith.constant 0 : index
    %c0_9 = arith.constant 0 : index
    %7 = vector.load %arg3[%c0_8, %c0_9] : memref<256x32xf32, #tpu.memory_space<vmem>>, vector<256x32xf32>
    %c0_10 = arith.constant 0 : index
    %c0_11 = arith.constant 0 : index
    %8 = vector.load %arg6[%c0_10, %c0_11] : memref<32x128xf32, #tpu.memory_space<vmem>>, vector<32x128xf32>
    %cst_12 = arith.constant dense<0.000000e+00> : vector<256x128xf32>
    %9 = tpu.matmul %7, %8, %cst_12 {dimension_numbers = #tpu.dot_dimension_numbers<[1], [0], [0], [1], [0, 0, 1, 1], [], []>} : vector<256x32xf32>, vector<32x128xf32>, vector<256x128xf32> -> vector<256x128xf32>
    %10 = arith.addf %6, %9 : vector<256x128xf32>
    %c0_13 = arith.constant 0 : index
    %c0_14 = arith.constant 0 : index
    %11 = vector.load %arg7[%c0_13, %c0_14] : memref<1x128xf32, #tpu.memory_space<vmem>>, vector<1x128xf32>
    %12 = vector.broadcast %11 : vector<1x128xf32> to vector<256x128xf32>
    %13 = arith.addf %10, %12 : vector<256x128xf32>
    %14 = math.tanh %13 : vector<256x128xf32>
    %c0_15 = arith.constant 0 : index
    %c0_16 = arith.constant 0 : index
    %15 = vector.load %arg8[%c0_15, %c0_16] : memref<128x128xf32, #tpu.memory_space<vmem>>, vector<128x128xf32>
    %cst_17 = arith.constant dense<0.000000e+00> : vector<256x128xf32>
    %16 = tpu.matmul %14, %15, %cst_17 {dimension_numbers = #tpu.dot_dimension_numbers<[1], [0], [0], [1], [0, 0, 1, 1], [], []>} : vector<256x128xf32>, vector<128x128xf32>, vector<256x128xf32> -> vector<256x128xf32>
    %c0_18 = arith.constant 0 : index
    %c0_19 = arith.constant 0 : index
    %17 = vector.load %arg9[%c0_18, %c0_19] : memref<1x128xf32, #tpu.memory_space<vmem>>, vector<1x128xf32>
    %18 = vector.broadcast %17 : vector<1x128xf32> to vector<256x128xf32>
    %19 = arith.addf %16, %18 : vector<256x128xf32>
    %c0_20 = arith.constant 0 : index
    %c0_21 = arith.constant 0 : index
    %20 = vector.load %arg10[%c0_20, %c0_21] : memref<256x128xf32, #tpu.memory_space<vmem>>, vector<256x128xf32>
    tpu.vector_store %arg10[%c0_20, %c0_21], %19 {strides = array<i32>} : memref<256x128xf32, #tpu.memory_space<vmem>>, vector<256x128xf32>,
    return
  }
  func.func @transform_0(%arg0: i32) -> (i32, i32) {
    %c0_i32 = arith.constant 0 : i32
    %c0_i32_0 = arith.constant 0 : i32
    return %arg0, %c0_i32 : i32, i32
  }
  func.func @transform_1(%arg0: i32) -> (i32, i32) {
    %c0_i32 = arith.constant 0 : i32
    %c0_i32_0 = arith.constant 0 : i32
    return %arg0, %c0_i32 : i32, i32
  }
  func.func @transform_2(%arg0: i32) -> (i32, i32) {
    %c0_i32 = arith.constant 0 : i32
    %c0_i32_0 = arith.constant 0 : i32
    return %arg0, %c0_i32 : i32, i32
  }
  func.func @transform_3(%arg0: i32) -> (i32, i32) {
    %c0_i32 = arith.constant 0 : i32
    %c0_i32_0 = arith.constant 0 : i32
    %c0_i32_1 = arith.constant 0 : i32
    return %c0_i32, %c0_i32_0 : i32, i32
  }
  func.func @transform_4(%arg0: i32) -> (i32, i32) {
    %c0_i32 = arith.constant 0 : i32
    %c0_i32_0 = arith.constant 0 : i32
    %c0_i32_1 = arith.constant 0 : i32
    return %c0_i32, %c0_i32_0 : i32, i32
  }
  func.func @transform_5(%arg0: i32) -> (i32, i32) {
    %c0_i32 = arith.constant 0 : i32
    %c0_i32_0 = arith.constant 0 : i32
    %c0_i32_1 = arith.constant 0 : i32
    return %c0_i32, %c0_i32_0 : i32, i32
  }
  func.func @transform_6(%arg0: i32) -> (i32, i32) {
    %c0_i32 = arith.constant 0 : i32
    %c0_i32_0 = arith.constant 0 : i32
    %c0_i32_1 = arith.constant 0 : i32
    return %c0_i32, %c0_i32_0 : i32, i32
  }
  func.func @transform_7(%arg0: i32) -> (i32, i32) {
    %c0_i32 = arith.constant 0 : i32
    %c0_i32_0 = arith.constant 0 : i32
    %c0_i32_1 = arith.constant 0 : i32
    return %c0_i32, %c0_i32_0 : i32, i32
  }
  func.func @transform_8(%arg0: i32) -> (i32, i32) {
    %c0_i32 = arith.constant 0 : i32
    %c0_i32_0 = arith.constant 0 : i32
    %c0_i32_1 = arith.constant 0 : i32
    return %c0_i32, %c0_i32_0 : i32, i32
  }
  func.func @transform_9(%arg0: i32) -> (i32, i32) {
    %c0_i32 = arith.constant 0 : i32
    %c0_i32_0 = arith.constant 0 : i32
    return %arg0, %c0_i32 : i32, i32
  }
}

</mosaic_0001>

<llo_original>
// kernel: tpu_custom_call.1
$region0: #{tpu_custom_call.1}
  #allocation0 [shape = 'u32[]', space=smem, size = 0x4, offset = 0x4, fixed_abs, tag = 'smem constant byte address 0x4 - core index']
  #allocation1 [shape = 'u32[144,128]{1,0:T(1,128)}', space=vmem, size = 0x12000, scoped, tag = 'internal scratch']
  %s0 = inlined_call_operand.vmem [shape: f32[1024,32], index: 0, kind: input, shape index: {}]
  %s1 = inlined_call_operand.vmem [shape: f32[1024,32], index: 1, kind: input, shape index: {}]
  %s2 = inlined_call_operand.vmem [shape: f32[1024,32], index: 2, kind: input, shape index: {}]
  %s3 = inlined_call_operand.vmem [shape: f32[32,128], index: 3, kind: input, shape index: {}]
  %s4 = inlined_call_operand.vmem [shape: f32[32,128], index: 4, kind: input, shape index: {}]
  %s5 = inlined_call_operand.vmem [shape: f32[32,128], index: 5, kind: input, shape index: {}]
  %s6 = inlined_call_operand.vmem [shape: f32[1,128], index: 6, kind: input, shape index: {}]
  %s7 = inlined_call_operand.vmem [shape: f32[128,128], index: 7, kind: input, shape index: {}]
  %s8 = inlined_call_operand.vmem [shape: f32[1,128], index: 8, kind: input, shape index: {}]
  %s9 = inlined_call_operand.hbm [shape: f32[1024,128], index: 9, kind: output, shape index: {}]
  %s10 = sld [smem:[#allocation0]]
  $region69: #{tpu_custom_call.1} parent=0
    _
  %s12 = ssub.s32 1, %s10
  %s13 = scalar_select 0, %s12, %s10
  $region1: #{tpu_custom_call.1} parent=0
    #allocation2 [shape = 'u8[262144]{0}', space=vmem, size = 0x40000, scoped, tag = 'output window, operand 0']
    #allocation3 [shape = 's32[2]{0}', space=sflag, size = 0x8, scoped, tag = 'scoped memory for tpu_custom_call.1']
    %14 = vsyncpa [#allocation3], 0
    %s15 = scalar_lea.sflag [#allocation3], 1
    %16 = vsyncpa %s15, 0
    loop: start=0, step=1, limit=6
    $region2: #{tpu_custom_call.1} parent=1 // loop_pre_header
      _
    $region3: #{tpu_custom_call.1} parent=1 // loop_header
      %s18 = sphi 0, %s22
      %p19 = scmp.ge.s32.totalorder %s18, 6
      %s28 = sphi 0, %s30
      %s31 = sphi 0, %s28
      %s32 = sphi 0, %s31
      %s48 = sphi 0, %s32
      %s54 = sphi 0, %s56
      %s57 = sphi 0, %s54
      %s58 = sphi 0, %s57
      %s74 = sphi 0, %s58
      %s80 = sphi 0, %s82
      %s83 = sphi 0, %s80
      %s84 = sphi 0, %s83
      %s100 = sphi 0, %s84
      %s104 = sphi 0, %s104
      %s106 = sphi 0, %s104
      %s107 = sphi 0, %s106
      %s121 = sphi 0, %s107
      %s125 = sphi 0, %s125
      %s127 = sphi 0, %s125
      %s128 = sphi 0, %s127
      %s142 = sphi 0, %s128
      %s146 = sphi 0, %s146
      %s148 = sphi 0, %s146
      %s149 = sphi 0, %s148
      %s163 = sphi 0, %s149
      %s167 = sphi 0, %s167
      %s169 = sphi 0, %s167
      %s170 = sphi 0, %s169
      %s184 = sphi 0, %s170
      %s188 = sphi 0, %s188
      %s190 = sphi 0, %s188
      %s191 = sphi 0, %s190
      %s205 = sphi 0, %s191
      %s209 = sphi 0, %s209
      %s211 = sphi 0, %s209
      %s212 = sphi 0, %s211
      %s226 = sphi 0, %s212
      %s232 = sphi 0, %s234
      %s235 = sphi 0, %s232
      %s236 = sphi 0, %s235
      %s252 = sphi 0, %s236
    $region4: #{tpu_custom_call.1} parent=1 // loop_header_branch
      %21 = sbr.rel (%p19) target = $region8
    $region5: #{tpu_custom_call.1} parent=1 // loop_body
      %s23 = ssub.s32 %s18, 1
      %s24 = ssub.s32 %s18, 2
      %s25 = sadd.s32 %s18, 1
      %s26 = ssub.s32 %s18, %s25
      %p27 = scmp.eq.s32.totalorder %s26, 0
      %s29 = sadd.s32 %s28, 1
      %s30 = scalar_select %p27, %s28, %s29
      %p33 = pneg %p27
      %p34 = scmp.eq.s32.totalorder %s18, 3
      %p35 = por %p33, %p34
      %p36 = scmp.ne.s32.totalorder %s28, %s31
      %p37 = scmp.eq.s32.totalorder %s18, 0
      %p38 = por %p36, %p37
      %p39 = scmp.ne.s32.totalorder %s28, %s31
      %p40 = scmp.eq.s32.totalorder %s23, 3
      %p41 = por %p39, %p40
      %p42 = scmp.ne.s32.totalorder %s31, %s32
      %p43 = scmp.eq.s32.totalorder %s23, 0
      %p44 = por %p42, %p43
      %p45 = scmp.ne.s32.totalorder %s31, %s32
      %p46 = scmp.eq.s32.totalorder %s24, 3
      %p47 = por %p45, %p46
      %p49 = scmp.ne.s32.totalorder %s32, %s48
      %p50 = scmp.eq.s32.totalorder %s24, 0
      %p51 = por %p49, %p50
      %s52 = ssub.s32 %s18, %s25
      %p53 = scmp.eq.s32.totalorder %s52, 0
      %s55 = sadd.s32 %s54, 1
      %s56 = scalar_select %p53, %s54, %s55
      %p59 = pneg %p53
      %p60 = scmp.eq.s32.totalorder %s18, 3
      %p61 = por %p59, %p60
      %p62 = scmp.ne.s32.totalorder %s54, %s57
      %p63 = scmp.eq.s32.totalorder %s18, 0
      %p64 = por %p62, %p63
      %p65 = scmp.ne.s32.totalorder %s54, %s57
      %p66 = scmp.eq.s32.totalorder %s23, 3
      %p67 = por %p65, %p66
      %p68 = scmp.ne.s32.totalorder %s57, %s58
      %p69 = scmp.eq.s32.totalorder %s23, 0
      %p70 = por %p68, %p69
      %p71 = scmp.ne.s32.totalorder %s57, %s58
      %p72 = scmp.eq.s32.totalorder %s24, 3
      %p73 = por %p71, %p72
      %p75 = scmp.ne.s32.totalorder %s58, %s74
      %p76 = scmp.eq.s32.totalorder %s24, 0
      %p77 = por %p75, %p76
      %s78 = ssub.s32 %s18, %s25
      %p79 = scmp.eq.s32.totalorder %s78, 0
      %s81 = sadd.s32 %s80, 1
      %s82 = scalar_select %p79, %s80, %s81
      %p85 = pneg %p79
      %p86 = scmp.eq.s32.totalorder %s18, 3
      %p87 = por %p85, %p86
      %p88 = scmp.ne.s32.totalorder %s80, %s83
      %p89 = scmp.eq.s32.totalorder %s18, 0
      %p90 = por %p88, %p89
      %p91 = scmp.ne.s32.totalorder %s80, %s83
      %p92 = scmp.eq.s32.totalorder %s23, 3
      %p93 = por %p91, %p92
      %p94 = scmp.ne.s32.totalorder %s83, %s84
      %p95 = scmp.eq.s32.totalorder %s23, 0
      %p96 = por %p94, %p95
      %p97 = scmp.ne.s32.totalorder %s83, %s84
      %p98 = scmp.eq.s32.totalorder %s24, 3
      %p99 = por %p97, %p98
      %p101 = scmp.ne.s32.totalorder %s84, %s100
      %p102 = scmp.eq.s32.totalorder %s24, 0
      %p103 = por %p101, %p102
      %s105 = sadd.s32 %s104, 1
      %p108 = scmp.eq.s32.totalorder %s18, 3
      %p109 = scmp.ne.s32.totalorder %s104, %s106
      %p110 = scmp.eq.s32.totalorder %s18, 0
      %p111 = por %p109, %p110
      %p112 = scmp.ne.s32.totalorder %s104, %s106
      %p113 = scmp.eq.s32.totalorder %s23, 3
      %p114 = por %p112, %p113
      %p115 = scmp.ne.s32.totalorder %s106, %s107
      %p116 = scmp.eq.s32.totalorder %s23, 0
      %p117 = por %p115, %p116
      %p118 = scmp.ne.s32.totalorder %s106, %s107
      %p119 = scmp.eq.s32.totalorder %s24, 3
      %p120 = por %p118, %p119
      %p122 = scmp.ne.s32.totalorder %s107, %s121
      %p123 = scmp.eq.s32.totalorder %s24, 0
      %p124 = por %p122, %p123
      %s126 = sadd.s32 %s125, 1
      %p129 = scmp.eq.s32.totalorder %s18, 3
      %p130 = scmp.ne.s32.totalorder %s125, %s127
      %p131 = scmp.eq.s32.totalorder %s18, 0
      %p132 = por %p130, %p131
      %p133 = scmp.ne.s32.totalorder %s125, %s127
      %p134 = scmp.eq.s32.totalorder %s23, 3
      %p135 = por %p133, %p134
      %p136 = scmp.ne.s32.totalorder %s127, %s128
      %p137 = scmp.eq.s32.totalorder %s23, 0
      %p138 = por %p136, %p137
      %p139 = scmp.ne.s32.totalorder %s127, %s128
      %p140 = scmp.eq.s32.totalorder %s24, 3
      %p141 = por %p139, %p140
      %p143 = scmp.ne.s32.totalorder %s128, %s142
      %p144 = scmp.eq.s32.totalorder %s24, 0
      %p145 = por %p143, %p144
      %s147 = sadd.s32 %s146, 1
      %p150 = scmp.eq.s32.totalorder %s18, 3
      %p151 = scmp.ne.s32.totalorder %s146, %s148
      %p152 = scmp.eq.s32.totalorder %s18, 0
      %p153 = por %p151, %p152
      %p154 = scmp.ne.s32.totalorder %s146, %s148
      %p155 = scmp.eq.s32.totalorder %s23, 3
      %p156 = por %p154, %p155
      %p157 = scmp.ne.s32.totalorder %s148, %s149
      %p158 = scmp.eq.s32.totalorder %s23, 0
      %p159 = por %p157, %p158
      %p160 = scmp.ne.s32.totalorder %s148, %s149
      %p161 = scmp.eq.s32.totalorder %s24, 3
      %p162 = por %p160, %p161
      %p164 = scmp.ne.s32.totalorder %s149, %s163
      %p165 = scmp.eq.s32.totalorder %s24, 0
      %p166 = por %p164, %p165
      %s168 = sadd.s32 %s167, 1
      %p171 = scmp.eq.s32.totalorder %s18, 3
      %p172 = scmp.ne.s32.totalorder %s167, %s169
      %p173 = scmp.eq.s32.totalorder %s18, 0
      %p174 = por %p172, %p173
      %p175 = scmp.ne.s32.totalorder %s167, %s169
      %p176 = scmp.eq.s32.totalorder %s23, 3
      %p177 = por %p175, %p176
      %p178 = scmp.ne.s32.totalorder %s169, %s170
      %p179 = scmp.eq.s32.totalorder %s23, 0
      %p180 = por %p178, %p179
      %p181 = scmp.ne.s32.totalorder %s169, %s170
      %p182 = scmp.eq.s32.totalorder %s24, 3
      %p183 = por %p181, %p182
      %p185 = scmp.ne.s32.totalorder %s170, %s184
      %p186 = scmp.eq.s32.totalorder %s24, 0
      %p187 = por %p185, %p186
      %s189 = sadd.s32 %s188, 1
      %p192 = scmp.eq.s32.totalorder %s18, 3
      %p193 = scmp.ne.s32.totalorder %s188, %s190
      %p194 = scmp.eq.s32.totalorder %s18, 0
      %p195 = por %p193, %p194
      %p196 = scmp.ne.s32.totalorder %s188, %s190
      %p197 = scmp.eq.s32.totalorder %s23, 3
      %p198 = por %p196, %p197
      %p199 = scmp.ne.s32.totalorder %s190, %s191
      %p200 = scmp.eq.s32.totalorder %s23, 0
      %p201 = por %p199, %p200
      %p202 = scmp.ne.s32.totalorder %s190, %s191
      %p203 = scmp.eq.s32.totalorder %s24, 3
      %p204 = por %p202, %p203
      %p206 = scmp.ne.s32.totalorder %s191, %s205
      %p207 = scmp.eq.s32.totalorder %s24, 0
      %p208 = por %p206, %p207
      %s210 = sadd.s32 %s209, 1
      %p213 = scmp.eq.s32.totalorder %s18, 3
      %p214 = scmp.ne.s32.totalorder %s209, %s211
      %p215 = scmp.eq.s32.totalorder %s18, 0
      %p216 = por %p214, %p215
      %p217 = scmp.ne.s32.totalorder %s209, %s211
      %p218 = scmp.eq.s32.totalorder %s23, 3
      %p219 = por %p217, %p218
      %p220 = scmp.ne.s32.totalorder %s211, %s212
      %p221 = scmp.eq.s32.totalorder %s23, 0
      %p222 = por %p220, %p221
      %p223 = scmp.ne.s32.totalorder %s211, %s212
      %p224 = scmp.eq.s32.totalorder %s24, 3
      %p225 = por %p223, %p224
      %p227 = scmp.ne.s32.totalorder %s212, %s226
      %p228 = scmp.eq.s32.totalorder %s24, 0
      %p229 = por %p227, %p228
      %s230 = ssub.s32 %s18, %s25
      %p231 = scmp.eq.s32.totalorder %s230, 0
      %s233 = sadd.s32 %s232, 1
      %s234 = scalar_select %p231, %s232, %s233
      %p237 = pneg %p231
      %p238 = scmp.eq.s32.totalorder %s18, 3
      %p239 = por %p237, %p238
      %p240 = scmp.ne.s32.totalorder %s232, %s235
      %p241 = scmp.eq.s32.totalorder %s18, 0
      %p242 = por %p240, %p241
      %p243 = scmp.ne.s32.totalorder %s232, %s235
      %p244 = scmp.eq.s32.totalorder %s23, 3
      %p245 = por %p243, %p244
      %p246 = scmp.ne.s32.totalorder %s235, %s236
      %p247 = scmp.eq.s32.totalorder %s23, 0
      %p248 = por %p246, %p247
      %p249 = scmp.ne.s32.totalorder %s235, %s236
      %p250 = scmp.eq.s32.totalorder %s24, 3
      %p251 = por %p249, %p250
      %p253 = scmp.ne.s32.totalorder %s236, %s252
      %p254 = scmp.eq.s32.totalorder %s24, 0
      %p255 = por %p253, %p254
      %p256 = scmp.le.s32.totalorder 1, %s18
      %p257 = scmp.lt.s32.totalorder %s18, 5
      %p258 = pnand %p256, %p257
      %p259 = pneg %p258
      // Predicated region
      $region9: #{tpu_custom_call.1} parent=5 // pred_check
        _
      $region10: #{tpu_custom_call.1} parent=5 // pred_check_branch
        %261 = sbr.rel (%p258) target = $region12
      $region11: #{tpu_custom_call.1} parent=5 // pred_region
        %s262 = ssub.s32 %s18, 1
        // Predicated region
        $region13: #{tpu_custom_call.1} parent=11 // pred_check
          %p263 = pneg %p117
        $region14: #{tpu_custom_call.1} parent=11 // pred_check_branch
          %265 = sbr.rel (%p263) target = $region16
        $region15: #{tpu_custom_call.1} parent=11 // pred_region
          _
        $region16: #{tpu_custom_call.1} parent=11 // pred_fallthru
          _
        // Predicated region
        $region17: #{tpu_custom_call.1} parent=11 // pred_check
          %p266 = pneg %p138
        $region18: #{tpu_custom_call.1} parent=11 // pred_check_branch
          %268 = sbr.rel (%p266) target = $region20
        $region19: #{tpu_custom_call.1} parent=11 // pred_region
          _
        $region20: #{tpu_custom_call.1} parent=11 // pred_fallthru
          _
        // Predicated region
        $region21: #{tpu_custom_call.1} parent=11 // pred_check
          %p269 = pneg %p159
        $region22: #{tpu_custom_call.1} parent=11 // pred_check_branch
          %271 = sbr.rel (%p269) target = $region24
        $region23: #{tpu_custom_call.1} parent=11 // pred_region
          _
        $region24: #{tpu_custom_call.1} parent=11 // pred_fallthru
          _
        // Predicated region
        $region25: #{tpu_custom_call.1} parent=11 // pred_check
          %p272 = pneg %p180
        $region26: #{tpu_custom_call.1} parent=11 // pred_check_branch
          %274 = sbr.rel (%p272) target = $region28
        $region27: #{tpu_custom_call.1} parent=11 // pred_region
          _
        $region28: #{tpu_custom_call.1} parent=11 // pred_fallthru
          _
        // Predicated region
        $region29: #{tpu_custom_call.1} parent=11 // pred_check
          %p275 = pneg %p201
        $region30: #{tpu_custom_call.1} parent=11 // pred_check_branch
          %277 = sbr.rel (%p275) target = $region32
        $region31: #{tpu_custom_call.1} parent=11 // pred_region
          _
        $region32: #{tpu_custom_call.1} parent=11 // pred_fallthru
          _
        // Predicated region
        $region33: #{tpu_custom_call.1} parent=11 // pred_check
          %p278 = pneg %p222
        $region34: #{tpu_custom_call.1} parent=11 // pred_check_branch
          %280 = sbr.rel (%p278) target = $region36
        $region35: #{tpu_custom_call.1} parent=11 // pred_region
          _
        $region36: #{tpu_custom_call.1} parent=11 // pred_fallthru
          _
      $region12: #{tpu_custom_call.1} parent=5 // pred_fallthru
        _
      %p281 = scmp.lt.s32.totalorder %s18, 4
      // Predicated region
      $region37: #{tpu_custom_call.1} parent=5 // pred_check
        %p282 = pneg %p281
      $region38: #{tpu_custom_call.1} parent=5 // pred_check_branch
        %284 = sbr.rel (%p282) target = $region40
      $region39: #{tpu_custom_call.1} parent=5 // pred_region
        // Predicated region
        $region41: #{tpu_custom_call.1} parent=39 // pred_check
          %p285 = pneg %p38
        $region42: #{tpu_custom_call.1} parent=39 // pred_check_branch
          %287 = sbr.rel (%p285) target = $region44
        $region43: #{tpu_custom_call.1} parent=39 // pred_region
          %s288 = smul.u32 32, %s18
          %p289 = scmp.lt.s32.totalorder %s288, 127
          %s290 = scalar_select %p289, %s288, 127
          %s291 = smul.addr %s290, 8
          %s292 = scalar_lea.vmem %s0, %s291
          %s293 = smul.u32 32, %s18
        $region44: #{tpu_custom_call.1} parent=39 // pred_fallthru
          _
        // Predicated region
        $region45: #{tpu_custom_call.1} parent=39 // pred_check
          %p294 = pneg %p64
        $region46: #{tpu_custom_call.1} parent=39 // pred_check_branch
          %296 = sbr.rel (%p294) target = $region48
        $region47: #{tpu_custom_call.1} parent=39 // pred_region
          %s297 = smul.u32 32, %s18
          %p298 = scmp.lt.s32.totalorder %s297, 127
          %s299 = scalar_select %p298, %s297, 127
          %s300 = smul.addr %s299, 8
          %s301 = scalar_lea.vmem %s1, %s300
          %s302 = smul.u32 32, %s18
        $region48: #{tpu_custom_call.1} parent=39 // pred_fallthru
          _
        // Predicated region
        $region49: #{tpu_custom_call.1} parent=39 // pred_check
          %p303 = pneg %p90
        $region50: #{tpu_custom_call.1} parent=39 // pred_check_branch
          %305 = sbr.rel (%p303) target = $region52
        $region51: #{tpu_custom_call.1} parent=39 // pred_region
          %s306 = smul.u32 32, %s18
          %p307 = scmp.lt.s32.totalorder %s306, 127
          %s308 = scalar_select %p307, %s306, 127
          %s309 = smul.addr %s308, 8
          %s310 = scalar_lea.vmem %s2, %s309
          %s311 = smul.u32 32, %s18
        $region52: #{tpu_custom_call.1} parent=39 // pred_fallthru
          _
      $region40: #{tpu_custom_call.1} parent=5 // pred_fallthru
        _
      %p312 = scmp.le.s32.totalorder 1, %s18
      %p313 = scmp.lt.s32.totalorder %s18, 5
      %p314 = pnand %p312, %p313
      %p315 = pneg %p314
      // Predicated region
      $region53: #{tpu_custom_call.1} parent=5 // pred_check
        _
      $region54: #{tpu_custom_call.1} parent=5 // pred_check_branch
        %317 = sbr.rel (%p314) target = $region56
      $region55: #{tpu_custom_call.1} parent=5 // pred_region
        %s318 = ssub.s32 %s18, 1
        %s319 = smul.u32 32, %s23
        %p320 = scmp.lt.s32.totalorder %s319, 127
        %s321 = scalar_select %p320, %s319, 127
        %s322 = smul.addr %s321, 8
        %s323 = scalar_lea.vmem %s0, %s322
        %p324 = pneg %p44
        %p325 = pneg %p41
        %s326 = smul.u32 32, %s23
        %p327 = scmp.lt.s32.totalorder %s326, 127
        %s328 = scalar_select %p327, %s326, 127
        %s329 = smul.addr %s328, 8
        %s330 = scalar_lea.vmem %s1, %s329
        %p331 = pneg %p70
        %p332 = pneg %p67
        %s333 = smul.u32 32, %s23
        %p334 = scmp.lt.s32.totalorder %s333, 127
        %s335 = scalar_select %p334, %s333, 127
        %s336 = smul.addr %s335, 8
        %s337 = scalar_lea.vmem %s2, %s336
        %p338 = pneg %p96
        %p339 = pneg %p93
        %p340 = pneg %p117
        %p341 = pneg %p114
        %p342 = pneg %p138
        %p343 = pneg %p135
        %p344 = pneg %p159
        %p345 = pneg %p156
        %p346 = pneg %p180
        %p347 = pneg %p177
        %p348 = pneg %p201
        %p349 = pneg %p198
        %p350 = pneg %p222
        %p351 = pneg %p219
        %p352 = pneg %p248
        %p353 = pneg %p245
        %s354 = sand.u32 %s235, 1
        %s355 = scalar_lea.sflag [#allocation3], %s354
        %s356 = sand.u32 %s235, 1
        %s357 = smul.addr %s356, 256
        %s358 = scalar_lea.vmem [#allocation2], %s357
        %s359 = smul.u32 32, %s23
        %p360 = scmp.lt.s32.totalorder %s359, 127
        %s361 = scalar_select %p360, %s359, 127
        %s362 = smul.addr %s361, 8
        %s363 = scalar_lea.vmem %s0, %s362
        %s364 = smul.u32 32, %s23
        %s365 = smul.u32 32, %s23
        %p366 = scmp.lt.s32.totalorder %s365, 127
        %s367 = scalar_select %p366, %s365, 127
        %s368 = smul.addr %s367, 8
        %s369 = scalar_lea.vmem %s1, %s368
        %s370 = smul.u32 32, %s23
        %s371 = smul.u32 32, %s23
        %p372 = scmp.lt.s32.totalorder %s371, 127
        %s373 = scalar_select %p372, %s371, 127
        %s374 = smul.addr %s373, 8
        %s375 = scalar_lea.vmem %s2, %s374
        %s376 = smul.u32 32, %s23
        %s377 = smul.u32 32, %s23
        %v378 = vld [vmem:[%s3] sm:$0xff]
        %v379 = vld [vmem:[%s3 + $0x8] sm:$0xff]
        %v380 = vld [vmem:[%s3 + $0x10] sm:$0xff]
        %v381 = vld [vmem:[%s3 + $0x18] sm:$0xff]
        %v382 = vld [vmem:[%s363] sm:$0xff]
        %v383 = vld [vmem:[%s363 + $0x8] sm:$0xff]
        %v384 = vld [vmem:[%s363 + $0x10] sm:$0xff]
        %v385 = vld [vmem:[%s363 + $0x18] sm:$0xff]
        %v386 = vld [vmem:[%s363 + $0x20] sm:$0xff]
        %v387 = vld [vmem:[%s363 + $0x28] sm:$0xff]
        %v388 = vld [vmem:[%s363 + $0x30] sm:$0xff]
        %v389 = vld [vmem:[%s363 + $0x38] sm:$0xff]
        %v390 = vld [vmem:[%s363 + $0x40] sm:$0xff]
        %v391 = vld [vmem:[%s363 + $0x48] sm:$0xff]
        %v392 = vld [vmem:[%s363 + $0x50] sm:$0xff]
        %v393 = vld [vmem:[%s363 + $0x58] sm:$0xff]
        %v394 = vld [vmem:[%s363 + $0x60] sm:$0xff]
        %v395 = vld [vmem:[%s363 + $0x68] sm:$0xff]
        %v396 = vld [vmem:[%s363 + $0x70] sm:$0xff]
        %v397 = vld [vmem:[%s363 + $0x78] sm:$0xff]
        %v398 = vld [vmem:[%s363 + $0x80] sm:$0xff]
        %v399 = vld [vmem:[%s363 + $0x88] sm:$0xff]
        %v400 = vld [vmem:[%s363 + $0x90] sm:$0xff]
        %v401 = vld [vmem:[%s363 + $0x98] sm:$0xff]
        %v402 = vld [vmem:[%s363 + $0xa0] sm:$0xff]
        %v403 = vld [vmem:[%s363 + $0xa8] sm:$0xff]
        %v404 = vld [vmem:[%s363 + $0xb0] sm:$0xff]
        %v405 = vld [vmem:[%s363 + $0xb8] sm:$0xff]
        %v406 = vld [vmem:[%s363 + $0xc0] sm:$0xff]
        %v407 = vld [vmem:[%s363 + $0xc8] sm:$0xff]
        %v408 = vld [vmem:[%s363 + $0xd0] sm:$0xff]
        %v409 = vld [vmem:[%s363 + $0xd8] sm:$0xff]
        %v410 = vld [vmem:[%s363 + $0xe0] sm:$0xff]
        %v411 = vld [vmem:[%s363 + $0xe8] sm:$0xff]
        %v412 = vld [vmem:[%s363 + $0xf0] sm:$0xff]
        %v413 = vld [vmem:[%s363 + $0xf8] sm:$0xff]
        %v414 = vld [vmem:[%s369] sm:$0xff]
        %v415 = vld [vmem:[%s369 + $0x8] sm:$0xff]
        %v416 = vld [vmem:[%s369 + $0x10] sm:$0xff]
        %v417 = vld [vmem:[%s369 + $0x18] sm:$0xff]
        %v418 = vld [vmem:[%s369 + $0x20] sm:$0xff]
        %v419 = vld [vmem:[%s369 + $0x28] sm:$0xff]
        %v420 = vld [vmem:[%s369 + $0x30] sm:$0xff]
        %v421 = vld [vmem:[%s369 + $0x38] sm:$0xff]
        %v422 = vld [vmem:[%s369 + $0x40] sm:$0xff]
        %v423 = vld [vmem:[%s369 + $0x48] sm:$0xff]
        %v424 = vld [vmem:[%s369 + $0x50] sm:$0xff]
        %v425 = vld [vmem:[%s369 + $0x58] sm:$0xff]
        %v426 = vld [vmem:[%s369 + $0x60] sm:$0xff]
        %v427 = vld [vmem:[%s369 + $0x68] sm:$0xff]
        %v428 = vld [vmem:[%s369 + $0x70] sm:$0xff]
        %v429 = vld [vmem:[%s369 + $0x78] sm:$0xff]
        %v430 = vld [vmem:[%s369 + $0x80] sm:$0xff]
        %v431 = vld [vmem:[%s369 + $0x88] sm:$0xff]
        %v432 = vld [vmem:[%s369 + $0x90] sm:$0xff]
        %v433 = vld [vmem:[%s369 + $0x98] sm:$0xff]
        %v434 = vld [vmem:[%s369 + $0xa0] sm:$0xff]
        %v435 = vld [vmem:[%s369 + $0xa8] sm:$0xff]
        %v436 = vld [vmem:[%s369 + $0xb0] sm:$0xff]
        %v437 = vld [vmem:[%s369 + $0xb8] sm:$0xff]
        %v438 = vld [vmem:[%s369 + $0xc0] sm:$0xff]
        %v439 = vld [vmem:[%s369 + $0xc8] sm:$0xff]
        %v440 = vld [vmem:[%s369 + $0xd0] sm:$0xff]
        %v441 = vld [vmem:[%s369 + $0xd8] sm:$0xff]
        %v442 = vld [vmem:[%s369 + $0xe0] sm:$0xff]
        %v443 = vld [vmem:[%s369 + $0xe8] sm:$0xff]
        %v444 = vld [vmem:[%s369 + $0xf0] sm:$0xff]
        %v445 = vld [vmem:[%s369 + $0xf8] sm:$0xff]
        %v446 = vld [vmem:[%s4] sm:$0xff]
        %v447 = vld [vmem:[%s4 + $0x8] sm:$0xff]
        %v448 = vld [vmem:[%s4 + $0x10] sm:$0xff]
        %v449 = vld [vmem:[%s4 + $0x18] sm:$0xff]
        %vm450 = vcmask 261120
        %v452 = vsel %vm450, %v414, 0
        %v455 = vsel %vm450, %v415, 0
        %v458 = vsel %vm450, %v416, 0
        %v461 = vsel %vm450, %v417, 0
        %v464 = vsel %vm450, %v418, 0
        %v467 = vsel %vm450, %v419, 0
        %v470 = vsel %vm450, %v420, 0
        %v473 = vsel %vm450, %v421, 0
        %v476 = vsel %vm450, %v422, 0
        %v479 = vsel %vm450, %v423, 0
        %v482 = vsel %vm450, %v424, 0
        %v485 = vsel %vm450, %v425, 0
        %v488 = vsel %vm450, %v426, 0
        %v491 = vsel %vm450, %v427, 0
        %v494 = vsel %vm450, %v428, 0
        %v497 = vsel %vm450, %v429, 0
        %v500 = vsel %vm450, %v430, 0
        %v503 = vsel %vm450, %v431, 0
        %v506 = vsel %vm450, %v432, 0
        %v509 = vsel %vm450, %v433, 0
        %v512 = vsel %vm450, %v434, 0
        %v515 = vsel %vm450, %v435, 0
        %v518 = vsel %vm450, %v436, 0
        %v521 = vsel %vm450, %v437, 0
        %v524 = vsel %vm450, %v438, 0
        %v527 = vsel %vm450, %v439, 0
        %v530 = vsel %vm450, %v440, 0
        %v533 = vsel %vm450, %v441, 0
        %v536 = vsel %vm450, %v442, 0
        %v539 = vsel %vm450, %v443, 0
        %v542 = vsel %vm450, %v444, 0
        %v545 = vsel %vm450, %v445, 0
        %547 = vmatprep.subr.mxu0 0.0
        %548 = vmatpush1.msra.mxu0 0.0
        %549 = vmatprep.subr.mxu0 0.0
        %550 = vmatpush1.msra.mxu0 0.0
        %551 = vmatprep.subr.mxu0 0.0
        %552 = vmatpush1.msra.mxu0 0.0
        %553 = vmatprep.subr.mxu0 0.0
        %554 = vmatpush1.msra.mxu0 0.0
        %555 = vmatprep.subr.mxu0 0.0
        %556 = vmatpush1.msra.mxu0 0.0
        %557 = vmatprep.subr.mxu0 0.0
        %558 = vmatpush1.msra.mxu0 0.0
        %559 = vmatprep.subr.mxu0 0.0
        %560 = vmatpush1.msra.mxu0 0.0
        %561 = vmatprep.subr.mxu0 0.0
        %562 = vmatpush1.msra.mxu0 0.0
        %563 = vmatprep.subr.mxu0 0.0
        %564 = vmatpush1.msra.mxu0 0.0
        %565 = vmatprep.subr.mxu0 0.0
        %566 = vmatpush1.msra.mxu0 0.0
        %567 = vmatprep.subr.mxu0 0.0
        %568 = vmatpush1.msra.mxu0 0.0
        %569 = vmatprep.subr.mxu0 0.0
        %570 = vmatpush1.msra.mxu0 0.0
        %571 = vmatprep.subr.mxu0 0.0
        %572 = vmatpush1.msra.mxu0 %v449
        %573 = vmatprep.subr.mxu0 0.0
        %574 = vmatpush1.msra.mxu0 %v448
        %575 = vmatprep.subr.mxu0 0.0
        %576 = vmatpush1.msra.mxu0 %v447
        %577 = vmatprep.subr.mxu0 0.0
        %578 = vmatpush1.msra.mxu0 %v446
        %579 = vmatprep.subr.mxu0 0.0
        %580 = vmatpush2.msra.mxu0 0.0
        %581 = vmatprep.subr.mxu0 0.0
        %582 = vmatpush2.msra.mxu0 0.0
        %583 = vmatprep.subr.mxu0 0.0
        %584 = vmatpush2.msra.mxu0 0.0
        %585 = vmatprep.subr.mxu0 0.0
        %586 = vmatpush2.msra.mxu0 0.0
        %587 = vmatprep.subr.mxu0 0.0
        %588 = vmatpush2.msra.mxu0 0.0
        %589 = vmatprep.subr.mxu0 0.0
        %590 = vmatpush2.msra.mxu0 0.0
        %591 = vmatprep.subr.mxu0 0.0
        %592 = vmatpush2.msra.mxu0 0.0
        %593 = vmatprep.subr.mxu0 0.0
        %594 = vmatpush2.msra.mxu0 0.0
        %595 = vmatprep.subr.mxu0 0.0
        %596 = vmatpush2.msra.mxu0 0.0
        %597 = vmatprep.subr.mxu0 0.0
        %598 = vmatpush2.msra.mxu0 0.0
        %599 = vmatprep.subr.mxu0 0.0
        %600 = vmatpush2.msra.mxu0 0.0
        %601 = vmatprep.subr.mxu0 0.0
        %602 = vmatpush2.msra.mxu0 0.0
        %603 = vmatprep.subr.mxu0 0.0
        %604 = vmatpush2.msra.mxu0 0.0
        %605 = vmatprep.subr.mxu0 0.0
        %606 = vmatpush2.msra.mxu0 0.0
        %607 = vmatprep.subr.mxu0 0.0
        %608 = vmatpush2.msra.mxu0 0.0
        %609 = vmatprep.subr.mxu0 0.0
        %610 = vmatpush2.msra.mxu0 0.0
        %611 = vmatprep.mubr.f32.mxu0 0.0
        %612 = vmatmul.mubr.f32.gmra.mxu0 %v452
        %v613 = vpop.f32.mrf.mxu0
        %v614 = vadd.f32 0.0, %v613
        %v615 = vpop.f32.mrf.mxu0
        %616 = vmatprep.mubr.f32.mxu0 0.0
        %617 = vmatmul.mubr.f32.gmra.mxu0 %v455
        %v618 = vpop.f32.mrf.mxu0
        %v619 = vadd.f32 0.0, %v618
        %v620 = vpop.f32.mrf.mxu0
        %621 = vmatprep.mubr.f32.mxu0 0.0
        %622 = vmatmul.mubr.f32.gmra.mxu0 %v458
        %v623 = vpop.f32.mrf.mxu0
        %v624 = vadd.f32 0.0, %v623
        %v625 = vpop.f32.mrf.mxu0
        %626 = vmatprep.mubr.f32.mxu0 0.0
        %627 = vmatmul.mubr.f32.gmra.mxu0 %v461
        %v628 = vpop.f32.mrf.mxu0
        %v629 = vadd.f32 0.0, %v628
        %v630 = vpop.f32.mrf.mxu0
        %631 = vmatprep.mubr.f32.mxu0 0.0
        %632 = vmatmul.mubr.f32.gmra.mxu0 %v464
        %v633 = vpop.f32.mrf.mxu0
        %v634 = vadd.f32 0.0, %v633
        %v635 = vpop.f32.mrf.mxu0
        %636 = vmatprep.mubr.f32.mxu0 0.0
        %637 = vmatmul.mubr.f32.gmra.mxu0 %v467
        %v638 = vpop.f32.mrf.mxu0
        %v639 = vadd.f32 0.0, %v638
        %v640 = vpop.f32.mrf.mxu0
        %641 = vmatprep.mubr.f32.mxu0 0.0
        %642 = vmatmul.mubr.f32.gmra.mxu0 %v470
        %v643 = vpop.f32.mrf.mxu0
        %v644 = vadd.f32 0.0, %v643
        %v645 = vpop.f32.mrf.mxu0
        %646 = vmatprep.mubr.f32.mxu0 0.0
        %647 = vmatmul.mubr.f32.gmra.mxu0 %v473
        %v648 = vpop.f32.mrf.mxu0
        %v649 = vadd.f32 0.0, %v648
        %v650 = vpop.f32.mrf.mxu0
        %651 = vmatprep.mubr.f32.mxu0 0.0
        %652 = vmatmul.mubr.f32.gmra.mxu0 %v476
        %v653 = vpop.f32.mrf.mxu0
        %v654 = vadd.f32 0.0, %v653
        %v655 = vpop.f32.mrf.mxu0
        %656 = vmatprep.mubr.f32.mxu0 0.0
        %657 = vmatmul.mubr.f32.gmra.mxu0 %v479
        %v658 = vpop.f32.mrf.mxu0
        %v659 = vadd.f32 0.0, %v658
        %v660 = vpop.f32.mrf.mxu0
        %661 = vmatprep.mubr.f32.mxu0 0.0
        %662 = vmatmul.mubr.f32.gmra.mxu0 %v482
        %v663 = vpop.f32.mrf.mxu0
        %v664 = vadd.f32 0.0, %v663
        %v665 = vpop.f32.mrf.mxu0
        %666 = vmatprep.mubr.f32.mxu0 0.0
        %667 = vmatmul.mubr.f32.gmra.mxu0 %v485
        %v668 = vpop.f32.mrf.mxu0
        %v669 = vadd.f32 0.0, %v668
        %v670 = vpop.f32.mrf.mxu0
        %671 = vmatprep.mubr.f32.mxu0 0.0
        %672 = vmatmul.mubr.f32.gmra.mxu0 %v488
        %v673 = vpop.f32.mrf.mxu0
        %v674 = vadd.f32 0.0, %v673
        %v675 = vpop.f32.mrf.mxu0
        %676 = vmatprep.mubr.f32.mxu0 0.0
        %677 = vmatmul.mubr.f32.gmra.mxu0 %v491
        %v678 = vpop.f32.mrf.mxu0
        %v679 = vadd.f32 0.0, %v678
        %v680 = vpop.f32.mrf.mxu0
        %681 = vmatprep.mubr.f32.mxu0 0.0
        %682 = vmatmul.mubr.f32.gmra.mxu0 %v494
        %v683 = vpop.f32.mrf.mxu0
        %v684 = vadd.f32 0.0, %v683
        %v685 = vpop.f32.mrf.mxu0
        %686 = vmatprep.mubr.f32.mxu0 0.0
        %687 = vmatmul.mubr.f32.gmra.mxu0 %v497
        %v688 = vpop.f32.mrf.mxu0
        %v689 = vadd.f32 0.0, %v688
        %v690 = vpop.f32.mrf.mxu0
        %691 = vmatprep.mubr.f32.mxu0 0.0
        %692 = vmatmul.mubr.f32.gmra.mxu0 %v500
        %v693 = vpop.f32.mrf.mxu0
        %v694 = vadd.f32 0.0, %v693
        %v695 = vpop.f32.mrf.mxu0
        %696 = vmatprep.mubr.f32.mxu0 0.0
        %697 = vmatmul.mubr.f32.gmra.mxu0 %v503
        %v698 = vpop.f32.mrf.mxu0
        %v699 = vadd.f32 0.0, %v698
        %v700 = vpop.f32.mrf.mxu0
        %701 = vmatprep.mubr.f32.mxu0 0.0
        %702 = vmatmul.mubr.f32.gmra.mxu0 %v506
        %v703 = vpop.f32.mrf.mxu0
        %v704 = vadd.f32 0.0, %v703
        %v705 = vpop.f32.mrf.mxu0
        %706 = vmatprep.mubr.f32.mxu0 0.0
        %707 = vmatmul.mubr.f32.gmra.mxu0 %v509
        %v708 = vpop.f32.mrf.mxu0
        %v709 = vadd.f32 0.0, %v708
        %v710 = vpop.f32.mrf.mxu0
        %711 = vmatprep.mubr.f32.mxu0 0.0
        %712 = vmatmul.mubr.f32.gmra.mxu0 %v512
        %v713 = vpop.f32.mrf.mxu0
        %v714 = vadd.f32 0.0, %v713
        %v715 = vpop.f32.mrf.mxu0
        %716 = vmatprep.mubr.f32.mxu0 0.0
        %717 = vmatmul.mubr.f32.gmra.mxu0 %v515
        %v718 = vpop.f32.mrf.mxu0
        %v719 = vadd.f32 0.0, %v718
        %v720 = vpop.f32.mrf.mxu0
        %721 = vmatprep.mubr.f32.mxu0 0.0
        %722 = vmatmul.mubr.f32.gmra.mxu0 %v518
        %v723 = vpop.f32.mrf.mxu0
        %v724 = vadd.f32 0.0, %v723
        %v725 = vpop.f32.mrf.mxu0
        %726 = vmatprep.mubr.f32.mxu0 0.0
        %727 = vmatmul.mubr.f32.gmra.mxu0 %v521
        %v728 = vpop.f32.mrf.mxu0
        %v729 = vadd.f32 0.0, %v728
        %v730 = vpop.f32.mrf.mxu0
        %731 = vmatprep.mubr.f32.mxu0 0.0
        %732 = vmatmul.mubr.f32.gmra.mxu0 %v524
        %v733 = vpop.f32.mrf.mxu0
        %v734 = vadd.f32 0.0, %v733
        %v735 = vpop.f32.mrf.mxu0
        %736 = vmatprep.mubr.f32.mxu0 0.0
        %737 = vmatmul.mubr.f32.gmra.mxu0 %v527
        %v738 = vpop.f32.mrf.mxu0
        %v739 = vadd.f32 0.0, %v738
        %v740 = vpop.f32.mrf.mxu0
        %741 = vmatprep.mubr.f32.mxu0 0.0
        %742 = vmatmul.mubr.f32.gmra.mxu0 %v530
        %v743 = vpop.f32.mrf.mxu0
        %v744 = vadd.f32 0.0, %v743
        %v745 = vpop.f32.mrf.mxu0
        %746 = vmatprep.mubr.f32.mxu0 0.0
        %747 = vmatmul.mubr.f32.gmra.mxu0 %v533
        %v748 = vpop.f32.mrf.mxu0
        %v749 = vadd.f32 0.0, %v748
        %v750 = vpop.f32.mrf.mxu0
        %751 = vmatprep.mubr.f32.mxu0 0.0
        %752 = vmatmul.mubr.f32.gmra.mxu0 %v536
        %v753 = vpop.f32.mrf.mxu0
        %v754 = vadd.f32 0.0, %v753
        %v755 = vpop.f32.mrf.mxu0
        %756 = vmatprep.mubr.f32.mxu0 0.0
        %757 = vmatmul.mubr.f32.gmra.mxu0 %v539
        %v758 = vpop.f32.mrf.mxu0
        %v759 = vadd.f32 0.0, %v758
        %v760 = vpop.f32.mrf.mxu0
        %761 = vmatprep.mubr.f32.mxu0 0.0
        %762 = vmatmul.mubr.f32.gmra.mxu0 %v542
        %v763 = vpop.f32.mrf.mxu0
        %v764 = vadd.f32 0.0, %v763
        %v765 = vpop.f32.mrf.mxu0
        %766 = vmatprep.mubr.f32.mxu0 0.0
        %767 = vmatmul.mubr.f32.gmra.mxu0 %v545
        %v768 = vpop.f32.mrf.mxu0
        %v769 = vadd.f32 0.0, %v768
        %v770 = vpop.f32.mrf.mxu0
        %771 = vdwg.mxu0
        %v773 = vsel %vm450, %v382, 0
        %v776 = vsel %vm450, %v383, 0
        %v779 = vsel %vm450, %v384, 0
        %v782 = vsel %vm450, %v385, 0
        %v785 = vsel %vm450, %v386, 0
        %v788 = vsel %vm450, %v387, 0
        %v791 = vsel %vm450, %v388, 0
        %v794 = vsel %vm450, %v389, 0
        %v797 = vsel %vm450, %v390, 0
        %v800 = vsel %vm450, %v391, 0
        %v803 = vsel %vm450, %v392, 0
        %v806 = vsel %vm450, %v393, 0
        %v809 = vsel %vm450, %v394, 0
        %v812 = vsel %vm450, %v395, 0
        %v815 = vsel %vm450, %v396, 0
        %v818 = vsel %vm450, %v397, 0
        %v821 = vsel %vm450, %v398, 0
        %v824 = vsel %vm450, %v399, 0
        %v827 = vsel %vm450, %v400, 0
        %v830 = vsel %vm450, %v401, 0
        %v833 = vsel %vm450, %v402, 0
        %v836 = vsel %vm450, %v403, 0
        %v839 = vsel %vm450, %v404, 0
        %v842 = vsel %vm450, %v405, 0
        %v845 = vsel %vm450, %v406, 0
        %v848 = vsel %vm450, %v407, 0
        %v851 = vsel %vm450, %v408, 0
        %v854 = vsel %vm450, %v409, 0
        %v857 = vsel %vm450, %v410, 0
        %v860 = vsel %vm450, %v411, 0
        %v863 = vsel %vm450, %v412, 0
        %v866 = vsel %vm450, %v413, 0
        %868 = vmatprep.subr.mxu0 0.0
        %869 = vmatpush1.msra.mxu0 0.0
        %870 = vmatprep.subr.mxu0 0.0
        %871 = vmatpush1.msra.mxu0 0.0
        %872 = vmatprep.subr.mxu0 0.0
        %873 = vmatpush1.msra.mxu0 0.0
        %874 = vmatprep.subr.mxu0 0.0
        %875 = vmatpush1.msra.mxu0 0.0
        %876 = vmatprep.subr.mxu0 0.0
        %877 = vmatpush1.msra.mxu0 0.0
        %878 = vmatprep.subr.mxu0 0.0
        %879 = vmatpush1.msra.mxu0 0.0
        %880 = vmatprep.subr.mxu0 0.0
        %881 = vmatpush1.msra.mxu0 0.0
        %882 = vmatprep.subr.mxu0 0.0
        %883 = vmatpush1.msra.mxu0 0.0
        %884 = vmatprep.subr.mxu0 0.0
        %885 = vmatpush1.msra.mxu0 0.0
        %886 = vmatprep.subr.mxu0 0.0
        %887 = vmatpush1.msra.mxu0 0.0
        %888 = vmatprep.subr.mxu0 0.0
        %889 = vmatpush1.msra.mxu0 0.0
        %890 = vmatprep.subr.mxu0 0.0
        %891 = vmatpush1.msra.mxu0 0.0
        %892 = vmatprep.subr.mxu0 0.0
        %893 = vmatpush1.msra.mxu0 %v381
        %894 = vmatprep.subr.mxu0 0.0
        %895 = vmatpush1.msra.mxu0 %v380
        %896 = vmatprep.subr.mxu0 0.0
        %897 = vmatpush1.msra.mxu0 %v379
        %898 = vmatprep.subr.mxu0 0.0
        %899 = vmatpush1.msra.mxu0 %v378
        %900 = vmatprep.subr.mxu0 0.0
        %901 = vmatpush2.msra.mxu0 0.0
        %902 = vmatprep.subr.mxu0 0.0
        %903 = vmatpush2.msra.mxu0 0.0
        %904 = vmatprep.subr.mxu0 0.0
        %905 = vmatpush2.msra.mxu0 0.0
        %906 = vmatprep.subr.mxu0 0.0
        %907 = vmatpush2.msra.mxu0 0.0
        %908 = vmatprep.subr.mxu0 0.0
        %909 = vmatpush2.msra.mxu0 0.0
        %910 = vmatprep.subr.mxu0 0.0
        %911 = vmatpush2.msra.mxu0 0.0
        %912 = vmatprep.subr.mxu0 0.0
        %913 = vmatpush2.msra.mxu0 0.0
        %914 = vmatprep.subr.mxu0 0.0
        %915 = vmatpush2.msra.mxu0 0.0
        %916 = vmatprep.subr.mxu0 0.0
        %917 = vmatpush2.msra.mxu0 0.0
        %918 = vmatprep.subr.mxu0 0.0
        %919 = vmatpush2.msra.mxu0 0.0
        %920 = vmatprep.subr.mxu0 0.0
        %921 = vmatpush2.msra.mxu0 0.0
        %922 = vmatprep.subr.mxu0 0.0
        %923 = vmatpush2.msra.mxu0 0.0
        %924 = vmatprep.subr.mxu0 0.0
        %925 = vmatpush2.msra.mxu0 0.0
        %926 = vmatprep.subr.mxu0 0.0
        %927 = vmatpush2.msra.mxu0 0.0
        %928 = vmatprep.subr.mxu0 0.0
        %929 = vmatpush2.msra.mxu0 0.0
        %930 = vmatprep.subr.mxu0 0.0
        %931 = vmatpush2.msra.mxu0 0.0
        %932 = vmatprep.mubr.f32.mxu0 0.0
        %933 = vmatmul.mubr.f32.gmra.mxu0 %v773
        %v934 = vpop.f32.mrf.mxu0
        %v935 = vadd.f32 %v614, %v934
        %v936 = vpop.f32.mrf.mxu0
        %937 = vmatprep.mubr.f32.mxu0 0.0
        %938 = vmatmul.mubr.f32.gmra.mxu0 %v776
        %v939 = vpop.f32.mrf.mxu0
        %v940 = vadd.f32 %v619, %v939
        %v941 = vpop.f32.mrf.mxu0
        %942 = vmatprep.mubr.f32.mxu0 0.0
        %943 = vmatmul.mubr.f32.gmra.mxu0 %v779
        %v944 = vpop.f32.mrf.mxu0
        %v945 = vadd.f32 %v624, %v944
        %v946 = vpop.f32.mrf.mxu0
        %947 = vmatprep.mubr.f32.mxu0 0.0
        %948 = vmatmul.mubr.f32.gmra.mxu0 %v782
        %v949 = vpop.f32.mrf.mxu0
        %v950 = vadd.f32 %v629, %v949
        %v951 = vpop.f32.mrf.mxu0
        %952 = vmatprep.mubr.f32.mxu0 0.0
        %953 = vmatmul.mubr.f32.gmra.mxu0 %v785
        %v954 = vpop.f32.mrf.mxu0
        %v955 = vadd.f32 %v634, %v954
        %v956 = vpop.f32.mrf.mxu0
        %957 = vmatprep.mubr.f32.mxu0 0.0
        %958 = vmatmul.mubr.f32.gmra.mxu0 %v788
        %v959 = vpop.f32.mrf.mxu0
        %v960 = vadd.f32 %v639, %v959
        %v961 = vpop.f32.mrf.mxu0
        %962 = vmatprep.mubr.f32.mxu0 0.0
        %963 = vmatmul.mubr.f32.gmra.mxu0 %v791
        %v964 = vpop.f32.mrf.mxu0
        %v965 = vadd.f32 %v644, %v964
        %v966 = vpop.f32.mrf.mxu0
        %967 = vmatprep.mubr.f32.mxu0 0.0
        %968 = vmatmul.mubr.f32.gmra.mxu0 %v794
        %v969 = vpop.f32.mrf.mxu0
        %v970 = vadd.f32 %v649, %v969
        %v971 = vpop.f32.mrf.mxu0
        %972 = vmatprep.mubr.f32.mxu0 0.0
        %973 = vmatmul.mubr.f32.gmra.mxu0 %v797
        %v974 = vpop.f32.mrf.mxu0
        %v975 = vadd.f32 %v654, %v974
        %v976 = vpop.f32.mrf.mxu0
        %977 = vmatprep.mubr.f32.mxu0 0.0
        %978 = vmatmul.mubr.f32.gmra.mxu0 %v800
        %v979 = vpop.f32.mrf.mxu0
        %v980 = vadd.f32 %v659, %v979
        %v981 = vpop.f32.mrf.mxu0
        %982 = vmatprep.mubr.f32.mxu0 0.0
        %983 = vmatmul.mubr.f32.gmra.mxu0 %v803
        %v984 = vpop.f32.mrf.mxu0
        %v985 = vadd.f32 %v664, %v984
        %v986 = vpop.f32.mrf.mxu0
        %987 = vmatprep.mubr.f32.mxu0 0.0
        %988 = vmatmul.mubr.f32.gmra.mxu0 %v806
        %v989 = vpop.f32.mrf.mxu0
        %v990 = vadd.f32 %v669, %v989
        %v991 = vpop.f32.mrf.mxu0
        %992 = vmatprep.mubr.f32.mxu0 0.0
        %993 = vmatmul.mubr.f32.gmra.mxu0 %v809
        %v994 = vpop.f32.mrf.mxu0
        %v995 = vadd.f32 %v674, %v994
        %v996 = vpop.f32.mrf.mxu0
        %997 = vmatprep.mubr.f32.mxu0 0.0
        %998 = vmatmul.mubr.f32.gmra.mxu0 %v812
        %v999 = vpop.f32.mrf.mxu0
        %v1000 = vadd.f32 %v679, %v999
        %v1001 = vpop.f32.mrf.mxu0
        %1002 = vmatprep.mubr.f32.mxu0 0.0
        %1003 = vmatmul.mubr.f32.gmra.mxu0 %v815
        %v1004 = vpop.f32.mrf.mxu0
        %v1005 = vadd.f32 %v684, %v1004
        %v1006 = vpop.f32.mrf.mxu0
        %1007 = vmatprep.mubr.f32.mxu0 0.0
        %1008 = vmatmul.mubr.f32.gmra.mxu0 %v818
        %v1009 = vpop.f32.mrf.mxu0
        %v1010 = vadd.f32 %v689, %v1009
        %v1011 = vpop.f32.mrf.mxu0
        %1012 = vmatprep.mubr.f32.mxu0 0.0
        %1013 = vmatmul.mubr.f32.gmra.mxu0 %v821
        %v1014 = vpop.f32.mrf.mxu0
        %v1015 = vadd.f32 %v694, %v1014
        %v1016 = vpop.f32.mrf.mxu0
        %1017 = vmatprep.mubr.f32.mxu0 0.0
        %1018 = vmatmul.mubr.f32.gmra.mxu0 %v824
        %v1019 = vpop.f32.mrf.mxu0
        %v1020 = vadd.f32 %v699, %v1019
        %v1021 = vpop.f32.mrf.mxu0
        %1022 = vmatprep.mubr.f32.mxu0 0.0
        %1023 = vmatmul.mubr.f32.gmra.mxu0 %v827
        %v1024 = vpop.f32.mrf.mxu0
        %v1025 = vadd.f32 %v704, %v1024
        %v1026 = vpop.f32.mrf.mxu0
        %1027 = vmatprep.mubr.f32.mxu0 0.0
        %1028 = vmatmul.mubr.f32.gmra.mxu0 %v830
        %v1029 = vpop.f32.mrf.mxu0
        %v1030 = vadd.f32 %v709, %v1029
        %v1031 = vpop.f32.mrf.mxu0
        %1032 = vmatprep.mubr.f32.mxu0 0.0
        %1033 = vmatmul.mubr.f32.gmra.mxu0 %v833
        %v1034 = vpop.f32.mrf.mxu0
        %v1035 = vadd.f32 %v714, %v1034
        %v1036 = vpop.f32.mrf.mxu0
        %1037 = vmatprep.mubr.f32.mxu0 0.0
        %1038 = vmatmul.mubr.f32.gmra.mxu0 %v836
        %v1039 = vpop.f32.mrf.mxu0
        %v1040 = vadd.f32 %v719, %v1039
        %v1041 = vpop.f32.mrf.mxu0
        %1042 = vmatprep.mubr.f32.mxu0 0.0
        %1043 = vmatmul.mubr.f32.gmra.mxu0 %v839
        %v1044 = vpop.f32.mrf.mxu0
        %v1045 = vadd.f32 %v724, %v1044
        %v1046 = vpop.f32.mrf.mxu0
        %1047 = vmatprep.mubr.f32.mxu0 0.0
        %1048 = vmatmul.mubr.f32.gmra.mxu0 %v842
        %v1049 = vpop.f32.mrf.mxu0
        %v1050 = vadd.f32 %v729, %v1049
        %v1051 = vpop.f32.mrf.mxu0
        %1052 = vmatprep.mubr.f32.mxu0 0.0
        %1053 = vmatmul.mubr.f32.gmra.mxu0 %v845
        %v1054 = vpop.f32.mrf.mxu0
        %v1055 = vadd.f32 %v734, %v1054
        %v1056 = vpop.f32.mrf.mxu0
        %1057 = vmatprep.mubr.f32.mxu0 0.0
        %1058 = vmatmul.mubr.f32.gmra.mxu0 %v848
        %v1059 = vpop.f32.mrf.mxu0
        %v1060 = vadd.f32 %v739, %v1059
        %v1061 = vpop.f32.mrf.mxu0
        %1062 = vmatprep.mubr.f32.mxu0 0.0
        %1063 = vmatmul.mubr.f32.gmra.mxu0 %v851
        %v1064 = vpop.f32.mrf.mxu0
        %v1065 = vadd.f32 %v744, %v1064
        %v1066 = vpop.f32.mrf.mxu0
        %1067 = vmatprep.mubr.f32.mxu0 0.0
        %1068 = vmatmul.mubr.f32.gmra.mxu0 %v854
        %v1069 = vpop.f32.mrf.mxu0
        %v1070 = vadd.f32 %v749, %v1069
        %v1071 = vpop.f32.mrf.mxu0
        %1072 = vmatprep.mubr.f32.mxu0 0.0
        %1073 = vmatmul.mubr.f32.gmra.mxu0 %v857
        %v1074 = vpop.f32.mrf.mxu0
        %v1075 = vadd.f32 %v754, %v1074
        %v1076 = vpop.f32.mrf.mxu0
        %1077 = vmatprep.mubr.f32.mxu0 0.0
        %1078 = vmatmul.mubr.f32.gmra.mxu0 %v860
        %v1079 = vpop.f32.mrf.mxu0
        %v1080 = vadd.f32 %v759, %v1079
        %v1081 = vpop.f32.mrf.mxu0
        %1082 = vmatprep.mubr.f32.mxu0 0.0
        %1083 = vmatmul.mubr.f32.gmra.mxu0 %v863
        %v1084 = vpop.f32.mrf.mxu0
        %v1085 = vadd.f32 %v764, %v1084
        %v1086 = vpop.f32.mrf.mxu0
        %1087 = vmatprep.mubr.f32.mxu0 0.0
        %1088 = vmatmul.mubr.f32.gmra.mxu0 %v866
        %v1089 = vpop.f32.mrf.mxu0
        %v1090 = vadd.f32 %v769, %v1089
        %v1091 = vpop.f32.mrf.mxu0
        %1092 = vdwg.mxu0
        %v1093 = vld [vmem:[%s375] sm:$0xff]
        %v1094 = vld [vmem:[%s375 + $0x8] sm:$0xff]
        %v1095 = vld [vmem:[%s375 + $0x10] sm:$0xff]
        %v1096 = vld [vmem:[%s375 + $0x18] sm:$0xff]
        %v1097 = vld [vmem:[%s375 + $0x20] sm:$0xff]
        %v1098 = vld [vmem:[%s375 + $0x28] sm:$0xff]
        %v1099 = vld [vmem:[%s375 + $0x30] sm:$0xff]
        %v1100 = vld [vmem:[%s375 + $0x38] sm:$0xff]
        %v1101 = vld [vmem:[%s375 + $0x40] sm:$0xff]
        %v1102 = vld [vmem:[%s375 + $0x48] sm:$0xff]
        %v1103 = vld [vmem:[%s375 + $0x50] sm:$0xff]
        %v1104 = vld [vmem:[%s375 + $0x58] sm:$0xff]
        %v1105 = vld [vmem:[%s375 + $0x60] sm:$0xff]
        %v1106 = vld [vmem:[%s375 + $0x68] sm:$0xff]
        %v1107 = vld [vmem:[%s375 + $0x70] sm:$0xff]
        %v1108 = vld [vmem:[%s375 + $0x78] sm:$0xff]
        %v1109 = vld [vmem:[%s375 + $0x80] sm:$0xff]
        %v1110 = vld [vmem:[%s375 + $0x88] sm:$0xff]
        %v1111 = vld [vmem:[%s375 + $0x90] sm:$0xff]
        %v1112 = vld [vmem:[%s375 + $0x98] sm:$0xff]
        %v1113 = vld [vmem:[%s375 + $0xa0] sm:$0xff]
        %v1114 = vld [vmem:[%s375 + $0xa8] sm:$0xff]
        %v1115 = vld [vmem:[%s375 + $0xb0] sm:$0xff]
        %v1116 = vld [vmem:[%s375 + $0xb8] sm:$0xff]
        %v1117 = vld [vmem:[%s375 + $0xc0] sm:$0xff]
        %v1118 = vld [vmem:[%s375 + $0xc8] sm:$0xff]
        %v1119 = vld [vmem:[%s375 + $0xd0] sm:$0xff]
        %v1120 = vld [vmem:[%s375 + $0xd8] sm:$0xff]
        %v1121 = vld [vmem:[%s375 + $0xe0] sm:$0xff]
        %v1122 = vld [vmem:[%s375 + $0xe8] sm:$0xff]
        %v1123 = vld [vmem:[%s375 + $0xf0] sm:$0xff]
        %v1124 = vld [vmem:[%s375 + $0xf8] sm:$0xff]
        %v1125 = vld [vmem:[%s5] sm:$0xff]
        %v1126 = vld [vmem:[%s5 + $0x8] sm:$0xff]
        %v1127 = vld [vmem:[%s5 + $0x10] sm:$0xff]
        %v1128 = vld [vmem:[%s5 + $0x18] sm:$0xff]
        %v1130 = vsel %vm450, %v1093, 0
        %v1133 = vsel %vm450, %v1094, 0
        %v1136 = vsel %vm450, %v1095, 0
        %v1139 = vsel %vm450, %v1096, 0
        %v1142 = vsel %vm450, %v1097, 0
        %v1145 = vsel %vm450, %v1098, 0
        %v1148 = vsel %vm450, %v1099, 0
        %v1151 = vsel %vm450, %v1100, 0
        %v1154 = vsel %vm450, %v1101, 0
        %v1157 = vsel %vm450, %v1102, 0
        %v1160 = vsel %vm450, %v1103, 0
        %v1163 = vsel %vm450, %v1104, 0
        %v1166 = vsel %vm450, %v1105, 0
        %v1169 = vsel %vm450, %v1106, 0
        %v1172 = vsel %vm450, %v1107, 0
        %v1175 = vsel %vm450, %v1108, 0
        %v1178 = vsel %vm450, %v1109, 0
        %v1181 = vsel %vm450, %v1110, 0
        %v1184 = vsel %vm450, %v1111, 0
        %v1187 = vsel %vm450, %v1112, 0
        %v1190 = vsel %vm450, %v1113, 0
        %v1193 = vsel %vm450, %v1114, 0
        %v1196 = vsel %vm450, %v1115, 0
        %v1199 = vsel %vm450, %v1116, 0
        %v1202 = vsel %vm450, %v1117, 0
        %v1205 = vsel %vm450, %v1118, 0
        %v1208 = vsel %vm450, %v1119, 0
        %v1211 = vsel %vm450, %v1120, 0
        %v1214 = vsel %vm450, %v1121, 0
        %v1217 = vsel %vm450, %v1122, 0
        %v1220 = vsel %vm450, %v1123, 0
        %v1223 = vsel %vm450, %v1124, 0
        %1225 = vmatprep.subr.mxu0 0.0
        %1226 = vmatpush1.msra.mxu0 0.0
        %1227 = vmatprep.subr.mxu0 0.0
        %1228 = vmatpush1.msra.mxu0 0.0
        %1229 = vmatprep.subr.mxu0 0.0
        %1230 = vmatpush1.msra.mxu0 0.0
        %1231 = vmatprep.subr.mxu0 0.0
        %1232 = vmatpush1.msra.mxu0 0.0
        %1233 = vmatprep.subr.mxu0 0.0
        %1234 = vmatpush1.msra.mxu0 0.0
        %1235 = vmatprep.subr.mxu0 0.0
        %1236 = vmatpush1.msra.mxu0 0.0
        %1237 = vmatprep.subr.mxu0 0.0
        %1238 = vmatpush1.msra.mxu0 0.0
        %1239 = vmatprep.subr.mxu0 0.0
        %1240 = vmatpush1.msra.mxu0 0.0
        %1241 = vmatprep.subr.mxu0 0.0
        %1242 = vmatpush1.msra.mxu0 0.0
        %1243 = vmatprep.subr.mxu0 0.0
        %1244 = vmatpush1.msra.mxu0 0.0
        %1245 = vmatprep.subr.mxu0 0.0
        %1246 = vmatpush1.msra.mxu0 0.0
        %1247 = vmatprep.subr.mxu0 0.0
        %1248 = vmatpush1.msra.mxu0 0.0
        %1249 = vmatprep.subr.mxu0 0.0
        %1250 = vmatpush1.msra.mxu0 %v1128
        %1251 = vmatprep.subr.mxu0 0.0
        %1252 = vmatpush1.msra.mxu0 %v1127
        %1253 = vmatprep.subr.mxu0 0.0
        %1254 = vmatpush1.msra.mxu0 %v1126
        %1255 = vmatprep.subr.mxu0 0.0
        %1256 = vmatpush1.msra.mxu0 %v1125
        %1257 = vmatprep.subr.mxu0 0.0
        %1258 = vmatpush2.msra.mxu0 0.0
        %1259 = vmatprep.subr.mxu0 0.0
        %1260 = vmatpush2.msra.mxu0 0.0
        %1261 = vmatprep.subr.mxu0 0.0
        %1262 = vmatpush2.msra.mxu0 0.0
        %1263 = vmatprep.subr.mxu0 0.0
        %1264 = vmatpush2.msra.mxu0 0.0
        %1265 = vmatprep.subr.mxu0 0.0
        %1266 = vmatpush2.msra.mxu0 0.0
        %1267 = vmatprep.subr.mxu0 0.0
        %1268 = vmatpush2.msra.mxu0 0.0
        %1269 = vmatprep.subr.mxu0 0.0
        %1270 = vmatpush2.msra.mxu0 0.0
        %1271 = vmatprep.subr.mxu0 0.0
        %1272 = vmatpush2.msra.mxu0 0.0
        %1273 = vmatprep.subr.mxu0 0.0
        %1274 = vmatpush2.msra.mxu0 0.0
        %1275 = vmatprep.subr.mxu0 0.0
        %1276 = vmatpush2.msra.mxu0 0.0
        %1277 = vmatprep.subr.mxu0 0.0
        %1278 = vmatpush2.msra.mxu0 0.0
        %1279 = vmatprep.subr.mxu0 0.0
        %1280 = vmatpush2.msra.mxu0 0.0
        %1281 = vmatprep.subr.mxu0 0.0
        %1282 = vmatpush2.msra.mxu0 0.0
        %1283 = vmatprep.subr.mxu0 0.0
        %1284 = vmatpush2.msra.mxu0 0.0
        %1285 = vmatprep.subr.mxu0 0.0
        %1286 = vmatpush2.msra.mxu0 0.0
        %1287 = vmatprep.subr.mxu0 0.0
        %1288 = vmatpush2.msra.mxu0 0.0
        %1289 = vmatprep.mubr.f32.mxu0 0.0
        %1290 = vmatmul.mubr.f32.gmra.mxu0 %v1130
        %v1291 = vpop.f32.mrf.mxu0
        %v1292 = vadd.f32 0.0, %v1291
        %v1293 = vpop.f32.mrf.mxu0
        %1294 = vmatprep.mubr.f32.mxu0 0.0
        %1295 = vmatmul.mubr.f32.gmra.mxu0 %v1133
        %v1296 = vpop.f32.mrf.mxu0
        %v1297 = vadd.f32 0.0, %v1296
        %v1298 = vpop.f32.mrf.mxu0
        %1299 = vmatprep.mubr.f32.mxu0 0.0
        %1300 = vmatmul.mubr.f32.gmra.mxu0 %v1136
        %v1301 = vpop.f32.mrf.mxu0
        %v1302 = vadd.f32 0.0, %v1301
        %v1303 = vpop.f32.mrf.mxu0
        %1304 = vmatprep.mubr.f32.mxu0 0.0
        %1305 = vmatmul.mubr.f32.gmra.mxu0 %v1139
        %v1306 = vpop.f32.mrf.mxu0
        %v1307 = vadd.f32 0.0, %v1306
        %v1308 = vpop.f32.mrf.mxu0
        %1309 = vmatprep.mubr.f32.mxu0 0.0
        %1310 = vmatmul.mubr.f32.gmra.mxu0 %v1142
        %v1311 = vpop.f32.mrf.mxu0
        %v1312 = vadd.f32 0.0, %v1311
        %v1313 = vpop.f32.mrf.mxu0
        %1314 = vmatprep.mubr.f32.mxu0 0.0
        %1315 = vmatmul.mubr.f32.gmra.mxu0 %v1145
        %v1316 = vpop.f32.mrf.mxu0
        %v1317 = vadd.f32 0.0, %v1316
        %v1318 = vpop.f32.mrf.mxu0
        %1319 = vmatprep.mubr.f32.mxu0 0.0
        %1320 = vmatmul.mubr.f32.gmra.mxu0 %v1148
        %v1321 = vpop.f32.mrf.mxu0
        %v1322 = vadd.f32 0.0, %v1321
        %v1323 = vpop.f32.mrf.mxu0
        %1324 = vmatprep.mubr.f32.mxu0 0.0
        %1325 = vmatmul.mubr.f32.gmra.mxu0 %v1151
        %v1326 = vpop.f32.mrf.mxu0
        %v1327 = vadd.f32 0.0, %v1326
        %v1328 = vpop.f32.mrf.mxu0
        %1329 = vmatprep.mubr.f32.mxu0 0.0
        %1330 = vmatmul.mubr.f32.gmra.mxu0 %v1154
        %v1331 = vpop.f32.mrf.mxu0
        %v1332 = vadd.f32 0.0, %v1331
        %v1333 = vpop.f32.mrf.mxu0
        %1334 = vmatprep.mubr.f32.mxu0 0.0
        %1335 = vmatmul.mubr.f32.gmra.mxu0 %v1157
        %v1336 = vpop.f32.mrf.mxu0
        %v1337 = vadd.f32 0.0, %v1336
        %v1338 = vpop.f32.mrf.mxu0
        %1339 = vmatprep.mubr.f32.mxu0 0.0
        %1340 = vmatmul.mubr.f32.gmra.mxu0 %v1160
        %v1341 = vpop.f32.mrf.mxu0
        %v1342 = vadd.f32 0.0, %v1341
        %v1343 = vpop.f32.mrf.mxu0
        %1344 = vmatprep.mubr.f32.mxu0 0.0
        %1345 = vmatmul.mubr.f32.gmra.mxu0 %v1163
        %v1346 = vpop.f32.mrf.mxu0
        %v1347 = vadd.f32 0.0, %v1346
        %v1348 = vpop.f32.mrf.mxu0
        %1349 = vmatprep.mubr.f32.mxu0 0.0
        %1350 = vmatmul.mubr.f32.gmra.mxu0 %v1166
        %v1351 = vpop.f32.mrf.mxu0
        %v1352 = vadd.f32 0.0, %v1351
        %v1353 = vpop.f32.mrf.mxu0
        %1354 = vmatprep.mubr.f32.mxu0 0.0
        %1355 = vmatmul.mubr.f32.gmra.mxu0 %v1169
        %v1356 = vpop.f32.mrf.mxu0
        %v1357 = vadd.f32 0.0, %v1356
        %v1358 = vpop.f32.mrf.mxu0
        %1359 = vmatprep.mubr.f32.mxu0 0.0
        %1360 = vmatmul.mubr.f32.gmra.mxu0 %v1172
        %v1361 = vpop.f32.mrf.mxu0
        %v1362 = vadd.f32 0.0, %v1361
        %v1363 = vpop.f32.mrf.mxu0
        %1364 = vmatprep.mubr.f32.mxu0 0.0
        %1365 = vmatmul.mubr.f32.gmra.mxu0 %v1175
        %v1366 = vpop.f32.mrf.mxu0
        %v1367 = vadd.f32 0.0, %v1366
        %v1368 = vpop.f32.mrf.mxu0
        %1369 = vmatprep.mubr.f32.mxu0 0.0
        %1370 = vmatmul.mubr.f32.gmra.mxu0 %v1178
        %v1371 = vpop.f32.mrf.mxu0
        %v1372 = vadd.f32 0.0, %v1371
        %v1373 = vpop.f32.mrf.mxu0
        %1374 = vmatprep.mubr.f32.mxu0 0.0
        %1375 = vmatmul.mubr.f32.gmra.mxu0 %v1181
        %v1376 = vpop.f32.mrf.mxu0
        %v1377 = vadd.f32 0.0, %v1376
        %v1378 = vpop.f32.mrf.mxu0
        %1379 = vmatprep.mubr.f32.mxu0 0.0
        %1380 = vmatmul.mubr.f32.gmra.mxu0 %v1184
        %v1381 = vpop.f32.mrf.mxu0
        %v1382 = vadd.f32 0.0, %v1381
        %v1383 = vpop.f32.mrf.mxu0
        %1384 = vmatprep.mubr.f32.mxu0 0.0
        %1385 = vmatmul.mubr.f32.gmra.mxu0 %v1187
        %v1386 = vpop.f32.mrf.mxu0
        %v1387 = vadd.f32 0.0, %v1386
        %v1388 = vpop.f32.mrf.mxu0
        %1389 = vmatprep.mubr.f32.mxu0 0.0
        %1390 = vmatmul.mubr.f32.gmra.mxu0 %v1190
        %v1391 = vpop.f32.mrf.mxu0
        %v1392 = vadd.f32 0.0, %v1391
        %v1393 = vpop.f32.mrf.mxu0
        %1394 = vmatprep.mubr.f32.mxu0 0.0
        %1395 = vmatmul.mubr.f32.gmra.mxu0 %v1193
        %v1396 = vpop.f32.mrf.mxu0
        %v1397 = vadd.f32 0.0, %v1396
        %v1398 = vpop.f32.mrf.mxu0
        %1399 = vmatprep.mubr.f32.mxu0 0.0
        %1400 = vmatmul.mubr.f32.gmra.mxu0 %v1196
        %v1401 = vpop.f32.mrf.mxu0
        %v1402 = vadd.f32 0.0, %v1401
        %v1403 = vpop.f32.mrf.mxu0
        %1404 = vmatprep.mubr.f32.mxu0 0.0
        %1405 = vmatmul.mubr.f32.gmra.mxu0 %v1199
        %v1406 = vpop.f32.mrf.mxu0
        %v1407 = vadd.f32 0.0, %v1406
        %v1408 = vpop.f32.mrf.mxu0
        %1409 = vmatprep.mubr.f32.mxu0 0.0
        %1410 = vmatmul.mubr.f32.gmra.mxu0 %v1202
        %v1411 = vpop.f32.mrf.mxu0
        %v1412 = vadd.f32 0.0, %v1411
        %v1413 = vpop.f32.mrf.mxu0
        %1414 = vmatprep.mubr.f32.mxu0 0.0
        %1415 = vmatmul.mubr.f32.gmra.mxu0 %v1205
        %v1416 = vpop.f32.mrf.mxu0
        %v1417 = vadd.f32 0.0, %v1416
        %v1418 = vpop.f32.mrf.mxu0
        %1419 = vmatprep.mubr.f32.mxu0 0.0
        %1420 = vmatmul.mubr.f32.gmra.mxu0 %v1208
        %v1421 = vpop.f32.mrf.mxu0
        %v1422 = vadd.f32 0.0, %v1421
        %v1423 = vpop.f32.mrf.mxu0
        %1424 = vmatprep.mubr.f32.mxu0 0.0
        %1425 = vmatmul.mubr.f32.gmra.mxu0 %v1211
        %v1426 = vpop.f32.mrf.mxu0
        %v1427 = vadd.f32 0.0, %v1426
        %v1428 = vpop.f32.mrf.mxu0
        %1429 = vmatprep.mubr.f32.mxu0 0.0
        %1430 = vmatmul.mubr.f32.gmra.mxu0 %v1214
        %v1431 = vpop.f32.mrf.mxu0
        %v1432 = vadd.f32 0.0, %v1431
        %v1433 = vpop.f32.mrf.mxu0
        %1434 = vmatprep.mubr.f32.mxu0 0.0
        %1435 = vmatmul.mubr.f32.gmra.mxu0 %v1217
        %v1436 = vpop.f32.mrf.mxu0
        %v1437 = vadd.f32 0.0, %v1436
        %v1438 = vpop.f32.mrf.mxu0
        %1439 = vmatprep.mubr.f32.mxu0 0.0
        %1440 = vmatmul.mubr.f32.gmra.mxu0 %v1220
        %v1441 = vpop.f32.mrf.mxu0
        %v1442 = vadd.f32 0.0, %v1441
        %v1443 = vpop.f32.mrf.mxu0
        %1444 = vmatprep.mubr.f32.mxu0 0.0
        %1445 = vmatmul.mubr.f32.gmra.mxu0 %v1223
        %v1446 = vpop.f32.mrf.mxu0
        %v1447 = vadd.f32 0.0, %v1446
        %v1448 = vpop.f32.mrf.mxu0
        %1449 = vdwg.mxu0
        %v1450 = vadd.f32 %v935, %v1292
        %v1451 = vadd.f32 %v940, %v1297
        %v1452 = vadd.f32 %v945, %v1302
        %v1453 = vadd.f32 %v950, %v1307
        %v1454 = vadd.f32 %v955, %v1312
        %v1455 = vadd.f32 %v960, %v1317
        %v1456 = vadd.f32 %v965, %v1322
        %v1457 = vadd.f32 %v970, %v1327
        %v1458 = vadd.f32 %v975, %v1332
        %v1459 = vadd.f32 %v980, %v1337
        %v1460 = vadd.f32 %v985, %v1342
        %v1461 = vadd.f32 %v990, %v1347
        %v1462 = vadd.f32 %v995, %v1352
        %v1463 = vadd.f32 %v1000, %v1357
        %v1464 = vadd.f32 %v1005, %v1362
        %v1465 = vadd.f32 %v1010, %v1367
        %v1466 = vadd.f32 %v1015, %v1372
        %v1467 = vadd.f32 %v1020, %v1377
        %v1468 = vadd.f32 %v1025, %v1382
        %v1469 = vadd.f32 %v1030, %v1387
        %v1470 = vadd.f32 %v1035, %v1392
        %v1471 = vadd.f32 %v1040, %v1397
        %v1472 = vadd.f32 %v1045, %v1402
        %v1473 = vadd.f32 %v1050, %v1407
        %v1474 = vadd.f32 %v1055, %v1412
        %v1475 = vadd.f32 %v1060, %v1417
        %v1476 = vadd.f32 %v1065, %v1422
        %v1477 = vadd.f32 %v1070, %v1427
        %v1478 = vadd.f32 %v1075, %v1432
        %v1479 = vadd.f32 %v1080, %v1437
        %v1480 = vadd.f32 %v1085, %v1442
        %v1481 = vadd.f32 %v1090, %v1447
        %v1482 = vld [vmem:[%s6] sm:$0x1]
        %v1484 = vlaneseq
        %v1485 = vshrl.u32 %v1484, 7
        %v1486 = vsub.s32 0, %v1485
        %v1487 = vrot.slane %v1482, %v1486
        %v1489 = vadd.f32 %v1450, %v1487
        %v1490 = vadd.f32 %v1451, %v1487
        %v1491 = vadd.f32 %v1452, %v1487
        %v1492 = vadd.f32 %v1453, %v1487
        %v1493 = vadd.f32 %v1454, %v1487
        %v1494 = vadd.f32 %v1455, %v1487
        %v1495 = vadd.f32 %v1456, %v1487
        %v1496 = vadd.f32 %v1457, %v1487
        %v1497 = vadd.f32 %v1458, %v1487
        %v1498 = vadd.f32 %v1459, %v1487
        %v1499 = vadd.f32 %v1460, %v1487
        %v1500 = vadd.f32 %v1461, %v1487
        %v1501 = vadd.f32 %v1462, %v1487
        %v1502 = vadd.f32 %v1463, %v1487
        %v1503 = vadd.f32 %v1464, %v1487
        %v1504 = vadd.f32 %v1465, %v1487
        %v1505 = vadd.f32 %v1466, %v1487
        %v1506 = vadd.f32 %v1467, %v1487
        %v1507 = vadd.f32 %v1468, %v1487
        %v1508 = vadd.f32 %v1469, %v1487
        %v1509 = vadd.f32 %v1470, %v1487
        %v1510 = vadd.f32 %v1471, %v1487
        %v1511 = vadd.f32 %v1472, %v1487
        %v1512 = vadd.f32 %v1473, %v1487
        %v1513 = vadd.f32 %v1474, %v1487
        %v1514 = vadd.f32 %v1475, %v1487
        %v1515 = vadd.f32 %v1476, %v1487
        %v1516 = vadd.f32 %v1477, %v1487
        %v1517 = vadd.f32 %v1478, %v1487
        %v1518 = vadd.f32 %v1479, %v1487
        %v1519 = vadd.f32 %v1480, %v1487
        %v1520 = vadd.f32 %v1481, %v1487
        %v1521 = vtanh.pop %v1489
        %v1522 = vtanh.pop %v1490
        %v1523 = vtanh.pop %v1491
        %v1524 = vtanh.pop %v1492
        %v1525 = vtanh.pop %v1493
        %v1526 = vtanh.pop %v1494
        %v1527 = vtanh.pop %v1495
        %v1528 = vtanh.pop %v1496
        %v1529 = vtanh.pop %v1497
        %v1530 = vtanh.pop %v1498
        %v1531 = vtanh.pop %v1499
        %v1532 = vtanh.pop %v1500
        %v1533 = vtanh.pop %v1501
        %v1534 = vtanh.pop %v1502
        %v1535 = vtanh.pop %v1503
        %v1536 = vtanh.pop %v1504
        %v1537 = vtanh.pop %v1505
        %v1538 = vtanh.pop %v1506
        %v1539 = vtanh.pop %v1507
        %v1540 = vtanh.pop %v1508
        %v1541 = vtanh.pop %v1509
        %v1542 = vtanh.pop %v1510
        %v1543 = vtanh.pop %v1511
        %v1544 = vtanh.pop %v1512
        %v1545 = vtanh.pop %v1513
        %v1546 = vtanh.pop %v1514
        %v1547 = vtanh.pop %v1515
        %v1548 = vtanh.pop %v1516
        %v1549 = vtanh.pop %v1517
        %v1550 = vtanh.pop %v1518
        %v1551 = vtanh.pop %v1519
        %v1552 = vtanh.pop %v1520
        %v1553 = vld [vmem:[%s7] sm:$0xff]
        %v1554 = vld [vmem:[%s7 + $0x8] sm:$0xff]
        %v1555 = vld [vmem:[%s7 + $0x10] sm:$0xff]
        %v1556 = vld [vmem:[%s7 + $0x18] sm:$0xff]
        %v1557 = vld [vmem:[%s7 + $0x20] sm:$0xff]
        %v1558 = vld [vmem:[%s7 + $0x28] sm:$0xff]
        %v1559 = vld [vmem:[%s7 + $0x30] sm:$0xff]
        %v1560 = vld [vmem:[%s7 + $0x38] sm:$0xff]
        %v1561 = vld [vmem:[%s7 + $0x40] sm:$0xff]
        %v1562 = vld [vmem:[%s7 + $0x48] sm:$0xff]
        %v1563 = vld [vmem:[%s7 + $0x50] sm:$0xff]
        %v1564 = vld [vmem:[%s7 + $0x58] sm:$0xff]
        %v1565 = vld [vmem:[%s7 + $0x60] sm:$0xff]
        %v1566 = vld [vmem:[%s7 + $0x68] sm:$0xff]
        %v1567 = vld [vmem:[%s7 + $0x70] sm:$0xff]
        %v1568 = vld [vmem:[%s7 + $0x78] sm:$0xff]
        %v1569 = vld [vmem:[%s8] sm:$0x1]
        %v1571 = vlaneseq
        %v1572 = vshrl.u32 %v1571, 7
        %v1573 = vsub.s32 0, %v1572
        %v1574 = vrot.slane %v1569, %v1573
        %1576 = vmatprep.subr.mxu0 0.0
        %1577 = vmatpush1.msra.mxu0 %v1568
        %1578 = vmatprep.subr.mxu0 0.0
        %1579 = vmatpush1.msra.mxu0 %v1567
        %1580 = vmatprep.subr.mxu0 0.0
        %1581 = vmatpush1.msra.mxu0 %v1566
        %1582 = vmatprep.subr.mxu0 0.0
        %1583 = vmatpush1.msra.mxu0 %v1565
        %1584 = vmatprep.subr.mxu0 0.0
        %1585 = vmatpush1.msra.mxu0 %v1564
        %1586 = vmatprep.subr.mxu0 0.0
        %1587 = vmatpush1.msra.mxu0 %v1563
        %1588 = vmatprep.subr.mxu0 0.0
        %1589 = vmatpush1.msra.mxu0 %v1562
        %1590 = vmatprep.subr.mxu0 0.0
        %1591 = vmatpush1.msra.mxu0 %v1561
        %1592 = vmatprep.subr.mxu0 0.0
        %1593 = vmatpush1.msra.mxu0 %v1560
        %1594 = vmatprep.subr.mxu0 0.0
        %1595 = vmatpush1.msra.mxu0 %v1559
        %1596 = vmatprep.subr.mxu0 0.0
        %1597 = vmatpush1.msra.mxu0 %v1558
        %1598 = vmatprep.subr.mxu0 0.0
        %1599 = vmatpush1.msra.mxu0 %v1557
        %1600 = vmatprep.subr.mxu0 0.0
        %1601 = vmatpush1.msra.mxu0 %v1556
        %1602 = vmatprep.subr.mxu0 0.0
        %1603 = vmatpush1.msra.mxu0 %v1555
        %1604 = vmatprep.subr.mxu0 0.0
        %1605 = vmatpush1.msra.mxu0 %v1554
        %1606 = vmatprep.subr.mxu0 0.0
        %1607 = vmatpush1.msra.mxu0 %v1553
        %1608 = vmatprep.subr.mxu0 0.0
        %1609 = vmatpush2.msra.mxu0 0.0
        %1610 = vmatprep.subr.mxu0 0.0
        %1611 = vmatpush2.msra.mxu0 0.0
        %1612 = vmatprep.subr.mxu0 0.0
        %1613 = vmatpush2.msra.mxu0 0.0
        %1614 = vmatprep.subr.mxu0 0.0
        %1615 = vmatpush2.msra.mxu0 0.0
        %1616 = vmatprep.subr.mxu0 0.0
        %1617 = vmatpush2.msra.mxu0 0.0
        %1618 = vmatprep.subr.mxu0 0.0
        %1619 = vmatpush2.msra.mxu0 0.0
        %1620 = vmatprep.subr.mxu0 0.0
        %1621 = vmatpush2.msra.mxu0 0.0
        %1622 = vmatprep.subr.mxu0 0.0
        %1623 = vmatpush2.msra.mxu0 0.0
        %1624 = vmatprep.subr.mxu0 0.0
        %1625 = vmatpush2.msra.mxu0 0.0
        %1626 = vmatprep.subr.mxu0 0.0
        %1627 = vmatpush2.msra.mxu0 0.0
        %1628 = vmatprep.subr.mxu0 0.0
        %1629 = vmatpush2.msra.mxu0 0.0
        %1630 = vmatprep.subr.mxu0 0.0
        %1631 = vmatpush2.msra.mxu0 0.0
        %1632 = vmatprep.subr.mxu0 0.0
        %1633 = vmatpush2.msra.mxu0 0.0
        %1634 = vmatprep.subr.mxu0 0.0
        %1635 = vmatpush2.msra.mxu0 0.0
        %1636 = vmatprep.subr.mxu0 0.0
        %1637 = vmatpush2.msra.mxu0 0.0
        %1638 = vmatprep.subr.mxu0 0.0
        %1639 = vmatpush2.msra.mxu0 0.0
        %1640 = vmatprep.mubr.f32.mxu0 0.0
        %1641 = vmatmul.mubr.f32.gmra.mxu0 %v1521
        %v1642 = vpop.f32.mrf.mxu0
        %v1643 = vadd.f32 %v1574, %v1642
        %v1644 = vpop.f32.mrf.mxu0
        %1645 = vmatprep.mubr.f32.mxu0 0.0
        %1646 = vmatmul.mubr.f32.gmra.mxu0 %v1522
        %v1647 = vpop.f32.mrf.mxu0
        %v1648 = vadd.f32 %v1574, %v1647
        %v1649 = vpop.f32.mrf.mxu0
        %1650 = vmatprep.mubr.f32.mxu0 0.0
        %1651 = vmatmul.mubr.f32.gmra.mxu0 %v1523
        %v1652 = vpop.f32.mrf.mxu0
        %v1653 = vadd.f32 %v1574, %v1652
        %v1654 = vpop.f32.mrf.mxu0
        %1655 = vmatprep.mubr.f32.mxu0 0.0
        %1656 = vmatmul.mubr.f32.gmra.mxu0 %v1524
        %v1657 = vpop.f32.mrf.mxu0
        %v1658 = vadd.f32 %v1574, %v1657
        %v1659 = vpop.f32.mrf.mxu0
        %1660 = vmatprep.mubr.f32.mxu0 0.0
        %1661 = vmatmul.mubr.f32.gmra.mxu0 %v1525
        %v1662 = vpop.f32.mrf.mxu0
        %v1663 = vadd.f32 %v1574, %v1662
        %v1664 = vpop.f32.mrf.mxu0
        %1665 = vmatprep.mubr.f32.mxu0 0.0
        %1666 = vmatmul.mubr.f32.gmra.mxu0 %v1526
        %v1667 = vpop.f32.mrf.mxu0
        %v1668 = vadd.f32 %v1574, %v1667
        %v1669 = vpop.f32.mrf.mxu0
        %1670 = vmatprep.mubr.f32.mxu0 0.0
        %1671 = vmatmul.mubr.f32.gmra.mxu0 %v1527
        %v1672 = vpop.f32.mrf.mxu0
        %v1673 = vadd.f32 %v1574, %v1672
        %v1674 = vpop.f32.mrf.mxu0
        %1675 = vmatprep.mubr.f32.mxu0 0.0
        %1676 = vmatmul.mubr.f32.gmra.mxu0 %v1528
        %v1677 = vpop.f32.mrf.mxu0
        %v1678 = vadd.f32 %v1574, %v1677
        %v1679 = vpop.f32.mrf.mxu0
        %1680 = vmatprep.mubr.f32.mxu0 0.0
        %1681 = vmatmul.mubr.f32.gmra.mxu0 %v1529
        %v1682 = vpop.f32.mrf.mxu0
        %v1683 = vadd.f32 %v1574, %v1682
        %v1684 = vpop.f32.mrf.mxu0
        %1685 = vmatprep.mubr.f32.mxu0 0.0
        %1686 = vmatmul.mubr.f32.gmra.mxu0 %v1530
        %v1687 = vpop.f32.mrf.mxu0
        %v1688 = vadd.f32 %v1574, %v1687
        %v1689 = vpop.f32.mrf.mxu0
        %1690 = vmatprep.mubr.f32.mxu0 0.0
        %1691 = vmatmul.mubr.f32.gmra.mxu0 %v1531
        %v1692 = vpop.f32.mrf.mxu0
        %v1693 = vadd.f32 %v1574, %v1692
        %v1694 = vpop.f32.mrf.mxu0
        %1695 = vmatprep.mubr.f32.mxu0 0.0
        %1696 = vmatmul.mubr.f32.gmra.mxu0 %v1532
        %v1697 = vpop.f32.mrf.mxu0
        %v1698 = vadd.f32 %v1574, %v1697
        %v1699 = vpop.f32.mrf.mxu0
        %1700 = vmatprep.mubr.f32.mxu0 0.0
        %1701 = vmatmul.mubr.f32.gmra.mxu0 %v1533
        %v1702 = vpop.f32.mrf.mxu0
        %v1703 = vadd.f32 %v1574, %v1702
        %v1704 = vpop.f32.mrf.mxu0
        %1705 = vmatprep.mubr.f32.mxu0 0.0
        %1706 = vmatmul.mubr.f32.gmra.mxu0 %v1534
        %v1707 = vpop.f32.mrf.mxu0
        %v1708 = vadd.f32 %v1574, %v1707
        %v1709 = vpop.f32.mrf.mxu0
        %1710 = vmatprep.mubr.f32.mxu0 0.0
        %1711 = vmatmul.mubr.f32.gmra.mxu0 %v1535
        %v1712 = vpop.f32.mrf.mxu0
        %v1713 = vadd.f32 %v1574, %v1712
        %v1714 = vpop.f32.mrf.mxu0
        %1715 = vmatprep.mubr.f32.mxu0 0.0
        %1716 = vmatmul.mubr.f32.gmra.mxu0 %v1536
        %v1717 = vpop.f32.mrf.mxu0
        %v1718 = vadd.f32 %v1574, %v1717
        %v1719 = vpop.f32.mrf.mxu0
        %1720 = vmatprep.mubr.f32.mxu0 0.0
        %1721 = vmatmul.mubr.f32.gmra.mxu0 %v1537
        %v1722 = vpop.f32.mrf.mxu0
        %v1723 = vadd.f32 %v1574, %v1722
        %v1724 = vpop.f32.mrf.mxu0
        %1725 = vmatprep.mubr.f32.mxu0 0.0
        %1726 = vmatmul.mubr.f32.gmra.mxu0 %v1538
        %v1727 = vpop.f32.mrf.mxu0
        %v1728 = vadd.f32 %v1574, %v1727
        %v1729 = vpop.f32.mrf.mxu0
        %1730 = vmatprep.mubr.f32.mxu0 0.0
        %1731 = vmatmul.mubr.f32.gmra.mxu0 %v1539
        %v1732 = vpop.f32.mrf.mxu0
        %v1733 = vadd.f32 %v1574, %v1732
        %v1734 = vpop.f32.mrf.mxu0
        %1735 = vmatprep.mubr.f32.mxu0 0.0
        %1736 = vmatmul.mubr.f32.gmra.mxu0 %v1540
        %v1737 = vpop.f32.mrf.mxu0
        %v1738 = vadd.f32 %v1574, %v1737
        %v1739 = vpop.f32.mrf.mxu0
        %1740 = vmatprep.mubr.f32.mxu0 0.0
        %1741 = vmatmul.mubr.f32.gmra.mxu0 %v1541
        %v1742 = vpop.f32.mrf.mxu0
        %v1743 = vadd.f32 %v1574, %v1742
        %v1744 = vpop.f32.mrf.mxu0
        %1745 = vmatprep.mubr.f32.mxu0 0.0
        %1746 = vmatmul.mubr.f32.gmra.mxu0 %v1542
        %v1747 = vpop.f32.mrf.mxu0
        %v1748 = vadd.f32 %v1574, %v1747
        %v1749 = vpop.f32.mrf.mxu0
        %1750 = vmatprep.mubr.f32.mxu0 0.0
        %1751 = vmatmul.mubr.f32.gmra.mxu0 %v1543
        %v1752 = vpop.f32.mrf.mxu0
        %v1753 = vadd.f32 %v1574, %v1752
        %v1754 = vpop.f32.mrf.mxu0
        %1755 = vmatprep.mubr.f32.mxu0 0.0
        %1756 = vmatmul.mubr.f32.gmra.mxu0 %v1544
        %v1757 = vpop.f32.mrf.mxu0
        %v1758 = vadd.f32 %v1574, %v1757
        %v1759 = vpop.f32.mrf.mxu0
        %1760 = vmatprep.mubr.f32.mxu0 0.0
        %1761 = vmatmul.mubr.f32.gmra.mxu0 %v1545
        %v1762 = vpop.f32.mrf.mxu0
        %v1763 = vadd.f32 %v1574, %v1762
        %v1764 = vpop.f32.mrf.mxu0
        %1765 = vmatprep.mubr.f32.mxu0 0.0
        %1766 = vmatmul.mubr.f32.gmra.mxu0 %v1546
        %v1767 = vpop.f32.mrf.mxu0
        %v1768 = vadd.f32 %v1574, %v1767
        %v1769 = vpop.f32.mrf.mxu0
        %1770 = vmatprep.mubr.f32.mxu0 0.0
        %1771 = vmatmul.mubr.f32.gmra.mxu0 %v1547
        %v1772 = vpop.f32.mrf.mxu0
        %v1773 = vadd.f32 %v1574, %v1772
        %v1774 = vpop.f32.mrf.mxu0
        %1775 = vmatprep.mubr.f32.mxu0 0.0
        %1776 = vmatmul.mubr.f32.gmra.mxu0 %v1548
        %v1777 = vpop.f32.mrf.mxu0
        %v1778 = vadd.f32 %v1574, %v1777
        %v1779 = vpop.f32.mrf.mxu0
        %1780 = vmatprep.mubr.f32.mxu0 0.0
        %1781 = vmatmul.mubr.f32.gmra.mxu0 %v1549
        %v1782 = vpop.f32.mrf.mxu0
        %v1783 = vadd.f32 %v1574, %v1782
        %v1784 = vpop.f32.mrf.mxu0
        %1785 = vmatprep.mubr.f32.mxu0 0.0
        %1786 = vmatmul.mubr.f32.gmra.mxu0 %v1550
        %v1787 = vpop.f32.mrf.mxu0
        %v1788 = vadd.f32 %v1574, %v1787
        %v1789 = vpop.f32.mrf.mxu0
        %1790 = vmatprep.mubr.f32.mxu0 0.0
        %1791 = vmatmul.mubr.f32.gmra.mxu0 %v1551
        %v1792 = vpop.f32.mrf.mxu0
        %v1793 = vadd.f32 %v1574, %v1792
        %v1794 = vpop.f32.mrf.mxu0
        %1795 = vmatprep.mubr.f32.mxu0 0.0
        %1796 = vmatmul.mubr.f32.gmra.mxu0 %v1552
        %v1797 = vpop.f32.mrf.mxu0
        %v1798 = vadd.f32 %v1574, %v1797
        %v1799 = vpop.f32.mrf.mxu0
        %1800 = vdwg.mxu0
        %1801 = vst [vmem:[%s358] sm:$0xff] %v1643
        %1802 = vst [vmem:[%s358 + $0x8] sm:$0xff] %v1648
        %1803 = vst [vmem:[%s358 + $0x10] sm:$0xff] %v1653
        %1804 = vst [vmem:[%s358 + $0x18] sm:$0xff] %v1658
        %1805 = vst [vmem:[%s358 + $0x20] sm:$0xff] %v1663
        %1806 = vst [vmem:[%s358 + $0x28] sm:$0xff] %v1668
        %1807 = vst [vmem:[%s358 + $0x30] sm:$0xff] %v1673
        %1808 = vst [vmem:[%s358 + $0x38] sm:$0xff] %v1678
        %1809 = vst [vmem:[%s358 + $0x40] sm:$0xff] %v1683
        %1810 = vst [vmem:[%s358 + $0x48] sm:$0xff] %v1688
        %1811 = vst [vmem:[%s358 + $0x50] sm:$0xff] %v1693
        %1812 = vst [vmem:[%s358 + $0x58] sm:$0xff] %v1698
        %1813 = vst [vmem:[%s358 + $0x60] sm:$0xff] %v1703
        %1814 = vst [vmem:[%s358 + $0x68] sm:$0xff] %v1708
        %1815 = vst [vmem:[%s358 + $0x70] sm:$0xff] %v1713
        %1816 = vst [vmem:[%s358 + $0x78] sm:$0xff] %v1718
        %1817 = vst [vmem:[%s358 + $0x80] sm:$0xff] %v1723
        %1818 = vst [vmem:[%s358 + $0x88] sm:$0xff] %v1728
        %1819 = vst [vmem:[%s358 + $0x90] sm:$0xff] %v1733
        %1820 = vst [vmem:[%s358 + $0x98] sm:$0xff] %v1738
        %1821 = vst [vmem:[%s358 + $0xa0] sm:$0xff] %v1743
        %1822 = vst [vmem:[%s358 + $0xa8] sm:$0xff] %v1748
        %1823 = vst [vmem:[%s358 + $0xb0] sm:$0xff] %v1753
        %1824 = vst [vmem:[%s358 + $0xb8] sm:$0xff] %v1758
        %1825 = vst [vmem:[%s358 + $0xc0] sm:$0xff] %v1763
        %1826 = vst [vmem:[%s358 + $0xc8] sm:$0xff] %v1768
        %1827 = vst [vmem:[%s358 + $0xd0] sm:$0xff] %v1773
        %1828 = vst [vmem:[%s358 + $0xd8] sm:$0xff] %v1778
        %1829 = vst [vmem:[%s358 + $0xe0] sm:$0xff] %v1783
        %1830 = vst [vmem:[%s358 + $0xe8] sm:$0xff] %v1788
        %1831 = vst [vmem:[%s358 + $0xf0] sm:$0xff] %v1793
        %1832 = vst [vmem:[%s358 + $0xf8] sm:$0xff] %v1798
        %s1833 = sand.u32 %s235, 1
        %s1834 = scalar_lea.sflag [#allocation3], %s1833
        %s1835 = sand.u32 %s235, 1
        %s1836 = smul.addr %s1835, 256
        %s1837 = scalar_lea.vmem [#allocation2], %s1836
        // Predicated region
        $region57: #{tpu_custom_call.1} parent=55 // pred_check
          %p1838 = pneg %p245
        $region58: #{tpu_custom_call.1} parent=55 // pred_check_branch
          %1840 = sbr.rel (%p1838) target = $region60
        $region59: #{tpu_custom_call.1} parent=55 // pred_region
          %s1841 = smul.u32 32, %s23
          %s1843 = ssub.s32 4096, 4096
          %1844 = vsyncadd %s1834, %s1843
          %s1845 = smul.addr %s1841, 128
          %s1846 = scalar_lea.hbm %s9, %s1845
          %s1847 = sshll.u32 %s1837, 4
          %s1848 = int_to_ptr.vmem [resolvable:$true] %s1847
          %1853 = dma.vmem_to_hbm [thread:$0]  %s1848, 4096, %s1846, %s1834, 128, 128, 8
        $region60: #{tpu_custom_call.1} parent=55 // pred_fallthru
          _
      $region56: #{tpu_custom_call.1} parent=5 // pred_fallthru
        _
      %p1854 = scmp.le.s32.totalorder 2, %s18
      // Predicated region
      $region61: #{tpu_custom_call.1} parent=5 // pred_check
        %p1855 = pneg %p1854
      $region62: #{tpu_custom_call.1} parent=5 // pred_check_branch
        %1857 = sbr.rel (%p1855) target = $region64
      $region63: #{tpu_custom_call.1} parent=5 // pred_region
        %s1858 = ssub.s32 %s18, 2
        // Predicated region
        $region65: #{tpu_custom_call.1} parent=63 // pred_check
          %p1859 = pneg %p251
        $region66: #{tpu_custom_call.1} parent=63 // pred_check_branch
          %1861 = sbr.rel (%p1859) target = $region68
        $region67: #{tpu_custom_call.1} parent=63 // pred_region
          %s1862 = sand.u32 %s236, 1
          %s1863 = scalar_lea.sflag [#allocation3], %s1862
          %s1864 = sand.u32 %s236, 1
          %s1865 = smul.addr %s1864, 256
          %s1866 = scalar_lea.vmem [#allocation2], %s1865
          %1867 = dma.done %s1863, 4096
        $region68: #{tpu_custom_call.1} parent=63 // pred_fallthru
          _
      $region64: #{tpu_custom_call.1} parent=5 // pred_fallthru
        _
    $region6: #{tpu_custom_call.1} parent=1 // loop_footer
      %s22 = sadd.s32 1, %s18
    $region7: #{tpu_custom_call.1} parent=1 // loop_footer_branch
      %17 = sbr.rel target = $region3
    $region8: #{tpu_custom_call.1} parent=1 // loop_exit
      _
    %1868 = vsyncpa [#allocation3], 1
    %s1869 = scalar_lea.sflag [#allocation3], 1
    %1870 = vsyncpa %s1869, 1

</llo_original>
